<compile_context>
chip_gen: v6e
topology: v6e:2x2x1
jax: 0.10.0
libtpu: 0.0.40
codegen_flags: <defaults>
</compile_context>

<pallas_src>
import functools

import jax
import jax.numpy as jnp
from jax import lax
from jax.experimental import pallas as pl
from jax.experimental.pallas import tpu as pltpu

# ----------------------------- config (toy sizes) ---------------------------
N_HEAD = 2
D_MODEL = 32
D_HEAD = 16
QLEN = 8
BSZ = 2
LN_EPS = 1e-5


# ------------------------------ fused kernel --------------------------------
def _rel_attn_kernel(w_ref, re_ref, rb_ref, rwb_ref, wqkv_ref, wo_ref,
                     g_ref, b_ref, out_ref, *, n_head, d_head, scale, eps):
    """One batch element: QKV -> AC/BD -> rel_shift (rolls) -> softmax -> P@V
    -> output projection -> residual + LayerNorm.  Everything stays in VMEM."""
    f32 = jnp.float32
    Q, DM = w_ref.shape                       # (qlen, d_model)
    H, D = n_head, d_head
    HD = H * D
    K = Q                                     # no-mems path: klen == qlen
    dn = (((1,), (1,)), ((), ()))             # contract last dims: a @ b.T

    w = w_ref[...]                            # (Q, DM)
    wqkv = wqkv_ref[...]                      # (DM, 3*HD)
    wo = wo_ref[...]                          # (HD, DM)
    rwb = rwb_ref[...]                        # (H, D)     r_w_bias
    rb = rb_ref[...]                          # (H, KREP)  r_bias, lane-tiled
    re = re_ref[...]                          # (H, KREP, D) r_emb, lane-tiled

    # Single batched QKV projection for this batch element.
    heads = jnp.dot(w, wqkv, preferred_element_type=f32)       # (Q, 3*HD)

    # Masks for the exact _rel_shift result (computed once, reused per head).
    ii = lax.broadcasted_iota(jnp.int32, (Q, K), 0)
    jj = lax.broadcasted_iota(jnp.int32, (Q, K), 1)
    low_mask = jj <= ii
    high_mask = jj >= ii + 2

    # TODO(synk): at real sizes add a (head, q-block) grid axis and stream K
    #             flash-style instead of holding full (Q, K) score blocks.
    attn_out = jnp.zeros((Q, DM), f32)
    for h in range(H):
        q_h = heads[:, h * D:(h + 1) * D]                      # (Q, D)
        k_h = heads[:, HD + h * D:HD + (h + 1) * D]            # (K, D)
        v_h = heads[:, 2 * HD + h * D:2 * HD + (h + 1) * D]    # (K, D)

        # AC = (q + r_w_bias) @ k^T
        ac = lax.dot_general(q_h + rwb[h:h + 1, :], k_h, dn,
                             preferred_element_type=f32)        # (Q, K)

        # B_ + D_ on a lane-tiled (Q, KREP) slab: column c holds key (c mod K),
        # so the MXU output is lane-dense (KREP = 128 here) and the roll's
        # wraparound over KREP lanes is equivalent to wraparound over K keys.
        x_rel = lax.dot_general(q_h, re[h], dn,
                                preferred_element_type=f32)      # (Q, KREP)
        x_rel = x_rel + rb[h:h + 1, :]

        # Exact _rel_shift via XLU rolls:
        #   shifted[i, j] = x[i, K-1-i+j]  if j <= i
        #                 = 0              if j == i+1
        #                 = x[i+1, j-i-2]  if j >= i+2
        # low[i, j]  = x[i, (j - (i+1)) mod K]   (per-row roll by i+1)
        # high[i, j] = low[i+1, j]               (rows shifted up by one)
        s_low = pltpu.roll(x_rel, shift=1, axis=1, stride=1, stride_axis=0)
        s_high = pltpu.roll(s_low, shift=Q - 1, axis=0)
        low = s_low[:, :K]
        high = s_high[:, :K]
        bd = jnp.where(low_mask, low,
                       jnp.where(high_mask, high, jnp.zeros_like(high)))

        # Scale + softmax over keys (no attention mask in this path).
        scores = (ac + bd) * scale
        m = jnp.max(scores, axis=-1, keepdims=True)
        p = jnp.exp(scores - m)
        denom = jnp.sum(p, axis=-1, keepdims=True)
        probs = p * pl.reciprocal(denom, approx=True)            # (Q, K)

        # P @ V and per-head slice of the output projection.
        av = jnp.dot(probs, v_h, preferred_element_type=f32)     # (Q, D)
        attn_out = attn_out + jnp.dot(av, wo[h * D:(h + 1) * D, :],
                                      preferred_element_type=f32)

    # Residual + post-LayerNorm (pre_lnorm=False path).
    x = w + attn_out
    mu = jnp.mean(x, axis=-1, keepdims=True)
    var = jnp.mean(jnp.square(x - mu), axis=-1, keepdims=True)
    y = (x - mu) * lax.rsqrt(var + eps)
    out_ref[...] = (y * g_ref[...] + b_ref[...]).astype(out_ref.dtype)


# ------------------------------ JAX wrapper ----------------------------------
@jax.jit
def rel_learnable_attn_forward(w, r_emb, r_w_bias, r_bias, params):
    """RelLearnableMultiHeadAttn.forward (mems=None, attention_mask=None, post-LN)."""
    qlen, bsz, d_model = w.shape
    klen = qlen                                  # no mems
    n_head, d_head = r_w_bias.shape
    # TODO(synk): mems concatenation, attention_mask, pre_lnorm branch and the
    #             klen > r_emb.shape[0] padding branch are not exercised here.
    r_emb = r_emb[-klen:]                        # (K, H, D)
    r_bias = r_bias[-klen:]                      # (K, H)

    # Lane-tile the relative tables so the key axis of the B_ matmul / rel-shift
    # roll is a full 128-lane (vreg-native) axis.  Tiny one-time prep.
    n_rep = 128 // klen if 128 % klen == 0 else 1
    re_t = jnp.transpose(r_emb, (1, 0, 2))       # (H, K, D)
    re_tiled = jnp.tile(re_t, (1, n_rep, 1))     # (H, n_rep*K, D)
    rb_t = jnp.transpose(r_bias, (1, 0))         # (H, K)
    rb_tiled = jnp.tile(rb_t, (1, n_rep))        # (H, n_rep*K)

    # (Q, B, DM) -> (B, Q, DM) so the batch axis is a clean leading grid axis
    # (a second-minor block of size 1 would violate the (8,128) tiling rule).
    wt = jnp.transpose(w, (1, 0, 2))

    kernel = functools.partial(_rel_attn_kernel, n_head=n_head, d_head=d_head,
                               scale=1.0 / d_head ** 0.5, eps=LN_EPS)
    out_bqd = pl.pallas_call(
        kernel,
        grid=(bsz,),
        in_specs=[
            pl.BlockSpec((None, qlen, d_model), lambda b: (b, 0, 0)),        # w
            pl.BlockSpec((n_head, n_rep * klen, d_head), lambda b: (0, 0, 0)),  # r_emb
            pl.BlockSpec((n_head, n_rep * klen), lambda b: (0, 0)),          # r_bias
            pl.BlockSpec((n_head, d_head), lambda b: (0, 0)),                # r_w_bias
            pl.BlockSpec((d_model, 3 * n_head * d_head), lambda b: (0, 0)),  # w_qkv
            pl.BlockSpec((n_head * d_head, d_model), lambda b: (0, 0)),      # w_o
            pl.BlockSpec((1, d_model), lambda b: (0, 0)),                    # ln_g
            pl.BlockSpec((1, d_model), lambda b: (0, 0)),                    # ln_b
        ],
        out_specs=pl.BlockSpec((None, qlen, d_model), lambda b: (b, 0, 0)),
        out_shape=jax.ShapeDtypeStruct((bsz, qlen, d_model), jnp.float32),
        compiler_params=pltpu.CompilerParams(
            dimension_semantics=("parallel",),
            vmem_limit_bytes=32 * 1024 * 1024),
    )(wt, re_tiled, rb_tiled, r_w_bias, params["w_qkv"], params["w_o"],
      params["ln_g"], params["ln_b"])
    return jnp.transpose(out_bqd, (1, 0, 2))     # back to (qlen, bsz, d_model)


# --------------------------- pure-JAX reference -------------------------------
def _rel_shift_ref(x):
    q, k = x.shape[0], x.shape[1]
    zp = jnp.zeros((q, 1) + x.shape[2:], x.dtype)
    xp = jnp.concatenate([zp, x], axis=1)
    xp = xp.reshape((k + 1, q) + x.shape[2:])
    return xp[1:].reshape(x.shape)


def reference_forward(w, r_emb, r_w_bias, r_bias, params):
    qlen, bsz, d_model = w.shape
    n_head, d_head = r_w_bias.shape
    w_heads = w @ params["w_qkv"]
    q, k, v = jnp.split(w_heads, 3, axis=-1)
    klen = k.shape[0]
    q = q.reshape(qlen, bsz, n_head, d_head)
    k = k.reshape(klen, bsz, n_head, d_head)
    v = v.reshape(klen, bsz, n_head, d_head)
    r_emb_k = r_emb[-klen:]
    r_bias_k = r_bias[-klen:]
    AC = jnp.einsum("ibnd,jbnd->ijbn", q + r_w_bias[None], k)
    B_ = jnp.einsum("ibnd,jnd->ijbn", q, r_emb_k)
    D_ = r_bias_k[None, :, None]
    BD = _rel_shift_ref(B_ + D_)
    score = (AC + BD) * (1.0 / d_head ** 0.5)
    prob = jax.nn.softmax(score, axis=1)
    vec = jnp.einsum("ijbn,jbnd->ibnd", prob, v).reshape(qlen, bsz, n_head * d_head)
    attn_out = vec @ params["w_o"]
    x = w + attn_out
    mu = jnp.mean(x, axis=-1, keepdims=True)
    var = jnp.mean(jnp.square(x - mu), axis=-1, keepdims=True)
    y = (x - mu) / jnp.sqrt(var + LN_EPS)
    return y * params["ln_g"].reshape(1, 1, -1) + params["ln_b"].reshape(1, 1, -1)


# --------------------------------- main ---------------------------------------
if __name__ == "__main__":
    key = jax.random.PRNGKey(0)
    ks = jax.random.split(key, 6)

    params = {
        "w_qkv": 0.02 * jax.random.normal(ks[0], (D_MODEL, 3 * N_HEAD * D_HEAD), jnp.float32),
        "w_o":   0.02 * jax.random.normal(ks[1], (N_HEAD * D_HEAD, D_MODEL), jnp.float32),
        "ln_g":  jnp.ones((1, D_MODEL), jnp.float32),
        "ln_b":  jnp.zeros((1, D_MODEL), jnp.float32),
    }

    w = jax.random.normal(ks[2], (QLEN, BSZ, D_MODEL), jnp.float32)
    r_emb = 0.02 * jax.random.normal(ks[3], (QLEN, N_HEAD, D_HEAD), jnp.float32)
    r_w_bias = 0.02 * jax.random.normal(ks[4], (N_HEAD, D_HEAD), jnp.float32)
    r_bias = 0.02 * jax.random.normal(ks[5], (QLEN, N_HEAD), jnp.float32)

    out = rel_learnable_attn_forward(w, r_emb, r_w_bias, r_bias, params)
    out = jax.block_until_ready(out)

    ref = reference_forward(w, r_emb, r_w_bias, r_bias, params)
    assert out.shape == (QLEN, BSZ, D_MODEL)
    # Tolerance relaxed slightly for pl.reciprocal(approx=True) in the softmax.
    assert jnp.allclose(out, ref, atol=2e-3, rtol=2e-3), "mismatch vs reference"

    print("KERNEL_OK")
</pallas_src>

<mosaic_0001>
module attributes {stable_mosaic.version = 11 : i64} {
  func.func @_rel_attn_kernel(%arg0: i32, %arg1: memref<1x8x32xf32, #tpu.memory_space<vmem>>, %arg2: memref<2x128x16xf32, #tpu.memory_space<vmem>>, %arg3: memref<2x128xf32, #tpu.memory_space<vmem>>, %arg4: memref<2x16xf32, #tpu.memory_space<vmem>>, %arg5: memref<32x96xf32, #tpu.memory_space<vmem>>, %arg6: memref<32x32xf32, #tpu.memory_space<vmem>>, %arg7: memref<1x32xf32, #tpu.memory_space<vmem>>, %arg8: memref<1x32xf32, #tpu.memory_space<vmem>>, %arg9: memref<1x8x32xf32, #tpu.memory_space<vmem>>) attributes {dimension_semantics = [#tpu.dimension_semantics<parallel>], iteration_bounds = array<i64: 2>, scalar_prefetch = 0 : i64, scratch_operands = 0 : i64, tpu.core_type = #tpu.core_type<tc>, window_params = [{transform_indices = @transform_0, window_bounds = array<i64: 1, 8, 32>}, {pipeline_mode = #tpu.pipeline_mode<synchronous>, transform_indices = @transform_1, window_bounds = array<i64: 2, 128, 16>}, {pipeline_mode = #tpu.pipeline_mode<synchronous>, transform_indices = @transform_2, window_bounds = array<i64: 2, 128>}, {pipeline_mode = #tpu.pipeline_mode<synchronous>, transform_indices = @transform_3, window_bounds = array<i64: 2, 16>}, {pipeline_mode = #tpu.pipeline_mode<synchronous>, transform_indices = @transform_4, window_bounds = array<i64: 32, 96>}, {pipeline_mode = #tpu.pipeline_mode<synchronous>, transform_indices = @transform_5, window_bounds = array<i64: 32, 32>}, {pipeline_mode = #tpu.pipeline_mode<synchronous>, transform_indices = @transform_6, window_bounds = array<i64: 1, 32>}, {pipeline_mode = #tpu.pipeline_mode<synchronous>, transform_indices = @transform_7, window_bounds = array<i64: 1, 32>}, {transform_indices = @transform_8, window_bounds = array<i64: 1, 8, 32>}]} {
    %c0 = arith.constant 0 : index
    %c0_0 = arith.constant 0 : index
    %c0_1 = arith.constant 0 : index
    %0 = vector.load %arg1[%c0, %c0_0, %c0_1] : memref<1x8x32xf32, #tpu.memory_space<vmem>>, vector<1x8x32xf32>
    %1 = vector.shape_cast %0 : vector<1x8x32xf32> to vector<8x32xf32>
    %c0_2 = arith.constant 0 : index
    %c0_3 = arith.constant 0 : index
    %2 = vector.load %arg5[%c0_2, %c0_3] : memref<32x96xf32, #tpu.memory_space<vmem>>, vector<32x96xf32>
    %c0_4 = arith.constant 0 : index
    %c0_5 = arith.constant 0 : index
    %3 = vector.load %arg6[%c0_4, %c0_5] : memref<32x32xf32, #tpu.memory_space<vmem>>, vector<32x32xf32>
    %c0_6 = arith.constant 0 : index
    %c0_7 = arith.constant 0 : index
    %4 = vector.load %arg4[%c0_6, %c0_7] : memref<2x16xf32, #tpu.memory_space<vmem>>, vector<2x16xf32>
    %c0_8 = arith.constant 0 : index
    %c0_9 = arith.constant 0 : index
    %5 = vector.load %arg3[%c0_8, %c0_9] : memref<2x128xf32, #tpu.memory_space<vmem>>, vector<2x128xf32>
    %c0_10 = arith.constant 0 : index
    %c0_11 = arith.constant 0 : index
    %c0_12 = arith.constant 0 : index
    %6 = vector.load %arg2[%c0_10, %c0_11, %c0_12] : memref<2x128x16xf32, #tpu.memory_space<vmem>>, vector<2x128x16xf32>
    %cst = arith.constant dense<0.000000e+00> : vector<8x96xf32>
    %7 = tpu.matmul %1, %2, %cst {dimension_numbers = #tpu.dot_dimension_numbers<[1], [0], [0], [1], [0, 0, 1, 1], [], []>} : vector<8x32xf32>, vector<32x96xf32>, vector<8x96xf32> -> vector<8x96xf32>
    %8 = tpu.iota {dimensions = array<i32: 0>} : vector<8x8xi32>
    %9 = tpu.iota {dimensions = array<i32: 1>} : vector<8x8xi32>
    %10 = arith.cmpi sle, %9, %8 : vector<8x8xi32>
    %c2_i32 = arith.constant 2 : i32
    %11 = vector.broadcast %c2_i32 : i32 to vector<8x8xi32>
    %12 = arith.addi %8, %11 : vector<8x8xi32>
    %13 = arith.cmpi sge, %9, %12 : vector<8x8xi32>
    %cst_13 = arith.constant 0.000000e+00 : f32
    %14 = vector.broadcast %cst_13 : f32 to vector<8x32xf32>
    %15 = vector.extract_strided_slice %7 {offsets = [0, 0], sizes = [8, 16], strides = [1, 1]} : vector<8x96xf32> to vector<8x16xf32>
    %16 = vector.extract_strided_slice %7 {offsets = [0, 32], sizes = [8, 16], strides = [1, 1]} : vector<8x96xf32> to vector<8x16xf32>
    %17 = vector.extract_strided_slice %7 {offsets = [0, 64], sizes = [8, 16], strides = [1, 1]} : vector<8x96xf32> to vector<8x16xf32>
    %18 = vector.extract_strided_slice %4 {offsets = [0, 0], sizes = [1, 16], strides = [1, 1]} : vector<2x16xf32> to vector<1x16xf32>
    %19 = vector.broadcast %18 : vector<1x16xf32> to vector<8x16xf32>
    %20 = arith.addf %15, %19 : vector<8x16xf32>
    %cst_14 = arith.constant dense<0.000000e+00> : vector<8x8xf32>
    %21 = tpu.matmul %20, %16, %cst_14 {dimension_numbers = #tpu.dot_dimension_numbers<[1], [1], [0], [0], [0, 0, 1, 0], [], []>} : vector<8x16xf32>, vector<8x16xf32>, vector<8x8xf32> -> vector<8x8xf32>
    %22 = vector.extract_strided_slice %6 {offsets = [0, 0, 0], sizes = [1, 128, 16], strides = [1, 1, 1]} : vector<2x128x16xf32> to vector<1x128x16xf32>
    %23 = vector.shape_cast %22 : vector<1x128x16xf32> to vector<128x16xf32>
    %cst_15 = arith.constant dense<0.000000e+00> : vector<8x128xf32>
    %24 = tpu.matmul %15, %23, %cst_15 {dimension_numbers = #tpu.dot_dimension_numbers<[1], [1], [0], [0], [0, 0, 1, 0], [], []>} : vector<8x16xf32>, vector<128x16xf32>, vector<8x128xf32> -> vector<8x128xf32>
    %25 = vector.extract_strided_slice %5 {offsets = [0, 0], sizes = [1, 128], strides = [1, 1]} : vector<2x128xf32> to vector<1x128xf32>
    %26 = vector.broadcast %25 : vector<1x128xf32> to vector<8x128xf32>
    %27 = arith.addf %24, %26 : vector<8x128xf32>
    %c1_i32 = arith.constant 1 : i32
    %28 = tpu.dynamic_rotate %27 by %c1_i32 dim 1 {stride = 1 : si32, stride_dimension = 0 : si32} : vector<8x128xf32>, i32 -> vector<8x128xf32>
    %c7_i32 = arith.constant 7 : i32
    %29 = tpu.dynamic_rotate %28 by %c7_i32 dim 0 : vector<8x128xf32>, i32 -> vector<8x128xf32>
    %30 = vector.extract_strided_slice %28 {offsets = [0, 0], sizes = [8, 8], strides = [1, 1]} : vector<8x128xf32> to vector<8x8xf32>
    %31 = vector.extract_strided_slice %29 {offsets = [0, 0], sizes = [8, 8], strides = [1, 1]} : vector<8x128xf32> to vector<8x8xf32>
    %cst_16 = arith.constant 0.000000e+00 : f32
    %32 = vector.broadcast %cst_16 : f32 to vector<8x8xf32>
    %33 = arith.select %13, %31, %32 : vector<8x8xi1>, vector<8x8xf32>
    %34 = arith.select %10, %30, %33 : vector<8x8xi1>, vector<8x8xf32>
    %35 = arith.addf %21, %34 : vector<8x8xf32>
    %cst_17 = arith.constant 2.500000e-01 : f32
    %36 = vector.broadcast %cst_17 : f32 to vector<8x8xf32>
    %37 = arith.mulf %35, %36 : vector<8x8xf32>
    %cst_18 = arith.constant dense<0xFF800000> : vector<8xf32>
    %38 = vector.multi_reduction <maximumf>, %37, %cst_18 [1] : vector<8x8xf32> to vector<8xf32>
    %39 = vector.shape_cast %38 : vector<8xf32> to vector<8x1xf32>
    %40 = vector.broadcast %39 : vector<8x1xf32> to vector<8x8xf32>
    %41 = arith.subf %37, %40 : vector<8x8xf32>
    %42 = math.exp %41 : vector<8x8xf32>
    %cst_19 = arith.constant dense<0.000000e+00> : vector<8xf32>
    %43 = vector.multi_reduction <add>, %42, %cst_19 [1] : vector<8x8xf32> to vector<8xf32>
    %44 = vector.shape_cast %43 : vector<8xf32> to vector<8x1xf32>
    %45 = tpu.reciprocal %44 {approx = true} : vector<8x1xf32> -> vector<8x1xf32>
    %46 = vector.broadcast %45 : vector<8x1xf32> to vector<8x8xf32>
    %47 = arith.mulf %42, %46 : vector<8x8xf32>
    %cst_20 = arith.constant dense<0.000000e+00> : vector<8x16xf32>
    %48 = tpu.matmul %47, %17, %cst_20 {dimension_numbers = #tpu.dot_dimension_numbers<[1], [0], [0], [1], [0, 0, 1, 1], [], []>} : vector<8x8xf32>, vector<8x16xf32>, vector<8x16xf32> -> vector<8x16xf32>
    %49 = vector.extract_strided_slice %3 {offsets = [0, 0], sizes = [16, 32], strides = [1, 1]} : vector<32x32xf32> to vector<16x32xf32>
    %cst_21 = arith.constant dense<0.000000e+00> : vector<8x32xf32>
    %50 = tpu.matmul %48, %49, %cst_21 {dimension_numbers = #tpu.dot_dimension_numbers<[1], [0], [0], [1], [0, 0, 1, 1], [], []>} : vector<8x16xf32>, vector<16x32xf32>, vector<8x32xf32> -> vector<8x32xf32>
    %51 = arith.addf %14, %50 : vector<8x32xf32>
    %52 = vector.extract_strided_slice %7 {offsets = [0, 16], sizes = [8, 16], strides = [1, 1]} : vector<8x96xf32> to vector<8x16xf32>
    %53 = vector.extract_strided_slice %7 {offsets = [0, 48], sizes = [8, 16], strides = [1, 1]} : vector<8x96xf32> to vector<8x16xf32>
    %54 = vector.extract_strided_slice %7 {offsets = [0, 80], sizes = [8, 16], strides = [1, 1]} : vector<8x96xf32> to vector<8x16xf32>
    %55 = vector.extract_strided_slice %4 {offsets = [1, 0], sizes = [1, 16], strides = [1, 1]} : vector<2x16xf32> to vector<1x16xf32>
    %56 = vector.broadcast %55 : vector<1x16xf32> to vector<8x16xf32>
    %57 = arith.addf %52, %56 : vector<8x16xf32>
    %cst_22 = arith.constant dense<0.000000e+00> : vector<8x8xf32>
    %58 = tpu.matmul %57, %53, %cst_22 {dimension_numbers = #tpu.dot_dimension_numbers<[1], [1], [0], [0], [0, 0, 1, 0], [], []>} : vector<8x16xf32>, vector<8x16xf32>, vector<8x8xf32> -> vector<8x8xf32>
    %59 = vector.extract_strided_slice %6 {offsets = [1, 0, 0], sizes = [1, 128, 16], strides = [1, 1, 1]} : vector<2x128x16xf32> to vector<1x128x16xf32>
    %60 = vector.shape_cast %59 : vector<1x128x16xf32> to vector<128x16xf32>
    %cst_23 = arith.constant dense<0.000000e+00> : vector<8x128xf32>
    %61 = tpu.matmul %52, %60, %cst_23 {dimension_numbers = #tpu.dot_dimension_numbers<[1], [1], [0], [0], [0, 0, 1, 0], [], []>} : vector<8x16xf32>, vector<128x16xf32>, vector<8x128xf32> -> vector<8x128xf32>
    %62 = vector.extract_strided_slice %5 {offsets = [1, 0], sizes = [1, 128], strides = [1, 1]} : vector<2x128xf32> to vector<1x128xf32>
    %63 = vector.broadcast %62 : vector<1x128xf32> to vector<8x128xf32>
    %64 = arith.addf %61, %63 : vector<8x128xf32>
    %c1_i32_24 = arith.constant 1 : i32
    %65 = tpu.dynamic_rotate %64 by %c1_i32_24 dim 1 {stride = 1 : si32, stride_dimension = 0 : si32} : vector<8x128xf32>, i32 -> vector<8x128xf32>
    %c7_i32_25 = arith.constant 7 : i32
    %66 = tpu.dynamic_rotate %65 by %c7_i32_25 dim 0 : vector<8x128xf32>, i32 -> vector<8x128xf32>
    %67 = vector.extract_strided_slice %65 {offsets = [0, 0], sizes = [8, 8], strides = [1, 1]} : vector<8x128xf32> to vector<8x8xf32>
    %68 = vector.extract_strided_slice %66 {offsets = [0, 0], sizes = [8, 8], strides = [1, 1]} : vector<8x128xf32> to vector<8x8xf32>
    %cst_26 = arith.constant 0.000000e+00 : f32
    %69 = vector.broadcast %cst_26 : f32 to vector<8x8xf32>
    %70 = arith.select %13, %68, %69 : vector<8x8xi1>, vector<8x8xf32>
    %71 = arith.select %10, %67, %70 : vector<8x8xi1>, vector<8x8xf32>
    %72 = arith.addf %58, %71 : vector<8x8xf32>
    %cst_27 = arith.constant 2.500000e-01 : f32
    %73 = vector.broadcast %cst_27 : f32 to vector<8x8xf32>
    %74 = arith.mulf %72, %73 : vector<8x8xf32>
    %cst_28 = arith.constant dense<0xFF800000> : vector<8xf32>
    %75 = vector.multi_reduction <maximumf>, %74, %cst_28 [1] : vector<8x8xf32> to vector<8xf32>
    %76 = vector.shape_cast %75 : vector<8xf32> to vector<8x1xf32>
    %77 = vector.broadcast %76 : vector<8x1xf32> to vector<8x8xf32>
    %78 = arith.subf %74, %77 : vector<8x8xf32>
    %79 = math.exp %78 : vector<8x8xf32>
    %cst_29 = arith.constant dense<0.000000e+00> : vector<8xf32>
    %80 = vector.multi_reduction <add>, %79, %cst_29 [1] : vector<8x8xf32> to vector<8xf32>
    %81 = vector.shape_cast %80 : vector<8xf32> to vector<8x1xf32>
    %82 = tpu.reciprocal %81 {approx = true} : vector<8x1xf32> -> vector<8x1xf32>
    %83 = vector.broadcast %82 : vector<8x1xf32> to vector<8x8xf32>
    %84 = arith.mulf %79, %83 : vector<8x8xf32>
    %cst_30 = arith.constant dense<0.000000e+00> : vector<8x16xf32>
    %85 = tpu.matmul %84, %54, %cst_30 {dimension_numbers = #tpu.dot_dimension_numbers<[1], [0], [0], [1], [0, 0, 1, 1], [], []>} : vector<8x8xf32>, vector<8x16xf32>, vector<8x16xf32> -> vector<8x16xf32>
    %86 = vector.extract_strided_slice %3 {offsets = [16, 0], sizes = [16, 32], strides = [1, 1]} : vector<32x32xf32> to vector<16x32xf32>
    %cst_31 = arith.constant dense<0.000000e+00> : vector<8x32xf32>
    %87 = tpu.matmul %85, %86, %cst_31 {dimension_numbers = #tpu.dot_dimension_numbers<[1], [0], [0], [1], [0, 0, 1, 1], [], []>} : vector<8x16xf32>, vector<16x32xf32>, vector<8x32xf32> -> vector<8x32xf32>
    %88 = arith.addf %51, %87 : vector<8x32xf32>
    %89 = arith.addf %1, %88 : vector<8x32xf32>
    %cst_32 = arith.constant dense<0.000000e+00> : vector<8xf32>
    %90 = vector.multi_reduction <add>, %89, %cst_32 [1] : vector<8x32xf32> to vector<8xf32>
    %91 = vector.shape_cast %90 : vector<8xf32> to vector<8x1xf32>
    %cst_33 = arith.constant 3.200000e+01 : f32
    %92 = vector.broadcast %cst_33 : f32 to vector<8x1xf32>
    %93 = arith.divf %91, %92 : vector<8x1xf32>
    %94 = vector.broadcast %93 : vector<8x1xf32> to vector<8x32xf32>
    %95 = arith.subf %89, %94 : vector<8x32xf32>
    %96 = arith.mulf %95, %95 : vector<8x32xf32>
    %cst_34 = arith.constant dense<0.000000e+00> : vector<8xf32>
    %97 = vector.multi_reduction <add>, %96, %cst_34 [1] : vector<8x32xf32> to vector<8xf32>
    %98 = vector.shape_cast %97 : vector<8xf32> to vector<8x1xf32>
    %cst_35 = arith.constant 3.200000e+01 : f32
    %99 = vector.broadcast %cst_35 : f32 to vector<8x1xf32>
    %100 = arith.divf %98, %99 : vector<8x1xf32>
    %101 = vector.broadcast %93 : vector<8x1xf32> to vector<8x32xf32>
    %102 = arith.subf %89, %101 : vector<8x32xf32>
    %cst_36 = arith.constant 9.99999974E-6 : f32
    %103 = vector.broadcast %cst_36 : f32 to vector<8x1xf32>
    %104 = arith.addf %100, %103 : vector<8x1xf32>
    %105 = math.rsqrt %104 : vector<8x1xf32>
    %106 = vector.broadcast %105 : vector<8x1xf32> to vector<8x32xf32>
    %107 = arith.mulf %102, %106 : vector<8x32xf32>
    %c0_37 = arith.constant 0 : index
    %c0_38 = arith.constant 0 : index
    %108 = vector.load %arg7[%c0_37, %c0_38] : memref<1x32xf32, #tpu.memory_space<vmem>>, vector<1x32xf32>
    %109 = vector.broadcast %108 : vector<1x32xf32> to vector<8x32xf32>
    %110 = arith.mulf %107, %109 : vector<8x32xf32>
    %c0_39 = arith.constant 0 : index
    %c0_40 = arith.constant 0 : index
    %111 = vector.load %arg8[%c0_39, %c0_40] : memref<1x32xf32, #tpu.memory_space<vmem>>, vector<1x32xf32>
    %112 = vector.broadcast %111 : vector<1x32xf32> to vector<8x32xf32>
    %113 = arith.addf %110, %112 : vector<8x32xf32>
    %c0_41 = arith.constant 0 : index
    %c0_42 = arith.constant 0 : index
    %c0_43 = arith.constant 0 : index
    %114 = vector.load %arg9[%c0_41, %c0_42, %c0_43] : memref<1x8x32xf32, #tpu.memory_space<vmem>>, vector<1x8x32xf32>
    %115 = vector.shape_cast %114 : vector<1x8x32xf32> to vector<8x32xf32>
    %116 = vector.shape_cast %113 : vector<8x32xf32> to vector<1x8x32xf32>
    tpu.vector_store %arg9[%c0_41, %c0_42, %c0_43], %116 {strides = array<i32>} : memref<1x8x32xf32, #tpu.memory_space<vmem>>, vector<1x8x32xf32>,
    return
  }
  func.func @transform_0(%arg0: i32) -> (i32, i32, i32) {
    %c0_i32 = arith.constant 0 : i32
    %c0_i32_0 = arith.constant 0 : i32
    %c0_i32_1 = arith.constant 0 : i32
    return %arg0, %c0_i32, %c0_i32_0 : i32, i32, i32
  }
  func.func @transform_1(%arg0: i32) -> (i32, i32, i32) {
    %c0_i32 = arith.constant 0 : i32
    %c0_i32_0 = arith.constant 0 : i32
    %c0_i32_1 = arith.constant 0 : i32
    %c0_i32_2 = arith.constant 0 : i32
    return %c0_i32, %c0_i32_0, %c0_i32_1 : i32, i32, i32
  }
  func.func @transform_2(%arg0: i32) -> (i32, i32) {
    %c0_i32 = arith.constant 0 : i32
    %c0_i32_0 = arith.constant 0 : i32
    %c0_i32_1 = arith.constant 0 : i32
    return %c0_i32, %c0_i32_0 : i32, i32
  }
  func.func @transform_3(%arg0: i32) -> (i32, i32) {
    %c0_i32 = arith.constant 0 : i32
    %c0_i32_0 = arith.constant 0 : i32
    %c0_i32_1 = arith.constant 0 : i32
    return %c0_i32, %c0_i32_0 : i32, i32
  }
  func.func @transform_4(%arg0: i32) -> (i32, i32) {
    %c0_i32 = arith.constant 0 : i32
    %c0_i32_0 = arith.constant 0 : i32
    %c0_i32_1 = arith.constant 0 : i32
    return %c0_i32, %c0_i32_0 : i32, i32
  }
  func.func @transform_5(%arg0: i32) -> (i32, i32) {
    %c0_i32 = arith.constant 0 : i32
    %c0_i32_0 = arith.constant 0 : i32
    %c0_i32_1 = arith.constant 0 : i32
    return %c0_i32, %c0_i32_0 : i32, i32
  }
  func.func @transform_6(%arg0: i32) -> (i32, i32) {
    %c0_i32 = arith.constant 0 : i32
    %c0_i32_0 = arith.constant 0 : i32
    %c0_i32_1 = arith.constant 0 : i32
    return %c0_i32, %c0_i32_0 : i32, i32
  }
  func.func @transform_7(%arg0: i32) -> (i32, i32) {
    %c0_i32 = arith.constant 0 : i32
    %c0_i32_0 = arith.constant 0 : i32
    %c0_i32_1 = arith.constant 0 : i32
    return %c0_i32, %c0_i32_0 : i32, i32
  }
  func.func @transform_8(%arg0: i32) -> (i32, i32, i32) {
    %c0_i32 = arith.constant 0 : i32
    %c0_i32_0 = arith.constant 0 : i32
    %c0_i32_1 = arith.constant 0 : i32
    return %arg0, %c0_i32, %c0_i32_0 : i32, i32, i32
  }
}

</mosaic_0001>

<llo_original>
// kernel: tile.19
$region0: #{tile.19}
  %s0 = inlined_call_operand.vmem [shape: f32[2,16,8], index: 0, kind: input, shape index: {}]
  %s1 = inlined_call_operand.vmem [shape: f32[2,128], index: 1, kind: output, shape index: {}]
  $region1: #{tile.19} parent=0
    #allocation0 [shape = 'u8[4096]{0}', space=vmem, size = 0x1000, scoped, tag = 'scoped mem for output reshape']
    %s2 = smov 3
    %v3 = vld [vmem:[%s0] ss:$16 sm:%s2]
    %vm4 = vcmask 64512
    %5 = vst.msk [vmem:[#allocation0] sm:$0x3] %vm4, %v3
    %s6 = scalar_lea.vmem %s0, 15
    %s7 = smov 3
    %v8 = vld [vmem:[%s6] ss:$16 sm:%s7]
    %9 = vrot.lane.b32.xlu0 %v8, 120
    %v10 = vpop.permute.xlu0 %9
    %vm11 = vcmask 1048512
    %12 = vst.msk [vmem:[#allocation0] sm:$0x3] %vm11, %v10
    %s13 = scalar_lea.vmem %s0, 14
    %s14 = smov 3
    %v15 = vld [vmem:[%s13] ss:$16 sm:%s14]
    %16 = vrot.lane.b32.xlu0 %v15, 112
    %v17 = vpop.permute.xlu0 %16
    %vm18 = vcmask 982912
    %19 = vst.msk [vmem:[#allocation0] sm:$0x3] %vm18, %v17
    %s20 = scalar_lea.vmem %s0, 13
    %s21 = smov 3
    %v22 = vld [vmem:[%s20] ss:$16 sm:%s21]
    %23 = vrot.lane.b32.xlu0 %v22, 104
    %v24 = vpop.permute.xlu0 %23
    %vm25 = vcmask 917312
    %26 = vst.msk [vmem:[#allocation0] sm:$0x3] %vm25, %v24
    %s27 = scalar_lea.vmem %s0, 12
    %s28 = smov 3
    %v29 = vld [vmem:[%s27] ss:$16 sm:%s28]
    %30 = vrot.lane.b32.xlu0 %v29, 96
    %v31 = vpop.permute.xlu0 %30
    %vm32 = vcmask 851712
    %33 = vst.msk [vmem:[#allocation0] sm:$0x3] %vm32, %v31
    %s34 = scalar_lea.vmem %s0, 11
    %s35 = smov 3
    %v36 = vld [vmem:[%s34] ss:$16 sm:%s35]
    %37 = vrot.lane.b32.xlu0 %v36, 88
    %v38 = vpop.permute.xlu0 %37
    %vm39 = vcmask 786112
    %40 = vst.msk [vmem:[#allocation0] sm:$0x3] %vm39, %v38
    %s41 = scalar_lea.vmem %s0, 10
    %s42 = smov 3
    %v43 = vld [vmem:[%s41] ss:$16 sm:%s42]
    %44 = vrot.lane.b32.xlu0 %v43, 80
    %v45 = vpop.permute.xlu0 %44
    %vm46 = vcmask 720512
    %47 = vst.msk [vmem:[#allocation0] sm:$0x3] %vm46, %v45
    %s48 = scalar_lea.vmem %s0, 9
    %s49 = smov 3
    %v50 = vld [vmem:[%s48] ss:$16 sm:%s49]
    %51 = vrot.lane.b32.xlu0 %v50, 72
    %v52 = vpop.permute.xlu0 %51
    %vm53 = vcmask 654912
    %54 = vst.msk [vmem:[#allocation0] sm:$0x3] %vm53, %v52
    %s55 = scalar_lea.vmem %s0, 8
    %s56 = smov 3
    %v57 = vld [vmem:[%s55] ss:$16 sm:%s56]
    %58 = vrot.lane.b32.xlu0 %v57, 64
    %v59 = vpop.permute.xlu0 %58
    %vm60 = vcmask 589312
    %61 = vst.msk [vmem:[#allocation0] sm:$0x3] %vm60, %v59
    %s62 = scalar_lea.vmem %s0, 7
    %s63 = smov 3
    %v64 = vld [vmem:[%s62] ss:$16 sm:%s63]
    %65 = vrot.lane.b32.xlu0 %v64, 56
    %v66 = vpop.permute.xlu0 %65
    %vm67 = vcmask 523712
    %68 = vst.msk [vmem:[#allocation0] sm:$0x3] %vm67, %v66
    %s69 = scalar_lea.vmem %s0, 6
    %s70 = smov 3
    %v71 = vld [vmem:[%s69] ss:$16 sm:%s70]
    %72 = vrot.lane.b32.xlu0 %v71, 48
    %v73 = vpop.permute.xlu0 %72
    %vm74 = vcmask 458112
    %75 = vst.msk [vmem:[#allocation0] sm:$0x3] %vm74, %v73
    %s76 = scalar_lea.vmem %s0, 5
    %s77 = smov 3
    %v78 = vld [vmem:[%s76] ss:$16 sm:%s77]
    %79 = vrot.lane.b32.xlu0 %v78, 40
    %v80 = vpop.permute.xlu0 %79
    %vm81 = vcmask 392512
    %82 = vst.msk [vmem:[#allocation0] sm:$0x3] %vm81, %v80
    %s83 = scalar_lea.vmem %s0, 4
    %s84 = smov 3
    %v85 = vld [vmem:[%s83] ss:$16 sm:%s84]
    %86 = vrot.lane.b32.xlu0 %v85, 32
    %v87 = vpop.permute.xlu0 %86
    %vm88 = vcmask 326912
    %89 = vst.msk [vmem:[#allocation0] sm:$0x3] %vm88, %v87
    %s90 = scalar_lea.vmem %s0, 3
    %s91 = smov 3
    %v92 = vld [vmem:[%s90] ss:$16 sm:%s91]
    %93 = vrot.lane.b32.xlu0 %v92, 24
    %v94 = vpop.permute.xlu0 %93
    %vm95 = vcmask 261312
    %96 = vst.msk [vmem:[#allocation0] sm:$0x3] %vm95, %v94
    %s97 = scalar_lea.vmem %s0, 2
    %s98 = smov 3
    %v99 = vld [vmem:[%s97] ss:$16 sm:%s98]
    %100 = vrot.lane.b32.xlu0 %v99, 16
    %v101 = vpop.permute.xlu0 %100
    %vm102 = vcmask 195712
    %103 = vst.msk [vmem:[#allocation0] sm:$0x3] %vm102, %v101
    %s104 = scalar_lea.vmem %s0, 1
    %s105 = smov 3
    %v106 = vld [vmem:[%s104] ss:$16 sm:%s105]
    %107 = vrot.lane.b32.xlu0 %v106, 8
    %v108 = vpop.permute.xlu0 %107
    %vm109 = vcmask 130112
    %110 = vst.msk [vmem:[#allocation0] sm:$0x3] %vm109, %v108
    %s112 = sshll.u32 1, 2
    %s113 = ssub.s32 %s112, 1
    %v115 = vld [vmem:[#allocation0] sm:%s113]
    %s116 = sshll.u32 1, 2
    %s117 = ssub.s32 %s116, 1
    %118 = vst [vmem:[%s1] sm:%s117] %v115

// kernel: rel_learnable_attn_forward.1
$region0: #{rel_learnable_attn_forward.1}
  #allocation0 [shape = 'u32[]', space=smem, size = 0x4, offset = 0x4, fixed_abs, tag = 'smem constant byte address 0x4 - core index']
  #allocation1 [shape = 'u32[144,128]{1,0:T(1,128)}', space=vmem, size = 0x12000, scoped, tag = 'internal scratch']
  %s0 = inlined_call_operand.vmem [shape: f32[2,8,32], index: 0, kind: input, shape index: {}]
  %s1 = inlined_call_operand.vmem [shape: f32[2,128,16], index: 1, kind: input, shape index: {}]
  %s2 = inlined_call_operand.vmem [shape: f32[2,128], index: 2, kind: input, shape index: {}]
  %s3 = inlined_call_operand.vmem [shape: f32[2,16], index: 3, kind: input, shape index: {}]
  %s4 = inlined_call_operand.vmem [shape: f32[32,96], index: 4, kind: input, shape index: {}]
  %s5 = inlined_call_operand.vmem [shape: f32[32,32], index: 5, kind: input, shape index: {}]
  %s6 = inlined_call_operand.vmem [shape: f32[1,32], index: 6, kind: input, shape index: {}]
  %s7 = inlined_call_operand.vmem [shape: f32[1,32], index: 7, kind: input, shape index: {}]
  %s8 = inlined_call_operand.vmem [shape: f32[2,8,32], index: 8, kind: output, shape index: {}]
  %s9 = sld [smem:[#allocation0]]
  $region65: #{rel_learnable_attn_forward.1} parent=0
    _
  %s11 = ssub.s32 1, %s9
  %s12 = scalar_select 0, %s11, %s9
  loop: start=0, step=1, limit=4
  $region2: #{rel_learnable_attn_forward.1} parent=0 // loop_pre_header
    _
  $region3: #{rel_learnable_attn_forward.1} parent=0 // loop_header
    %s14 = sphi 0, %s18
    %p15 = scmp.ge.s32.totalorder %s14, 4
    %s24 = sphi 0, %s26
    %s27 = sphi 0, %s24
    %s28 = sphi 0, %s27
    %s44 = sphi 0, %s28
    %s48 = sphi 0, %s48
    %s50 = sphi 0, %s48
    %s51 = sphi 0, %s50
    %s65 = sphi 0, %s51
    %s69 = sphi 0, %s69
    %s71 = sphi 0, %s69
    %s72 = sphi 0, %s71
    %s86 = sphi 0, %s72
    %s90 = sphi 0, %s90
    %s92 = sphi 0, %s90
    %s93 = sphi 0, %s92
    %s107 = sphi 0, %s93
    %s111 = sphi 0, %s111
    %s113 = sphi 0, %s111
    %s114 = sphi 0, %s113
    %s128 = sphi 0, %s114
    %s132 = sphi 0, %s132
    %s134 = sphi 0, %s132
    %s135 = sphi 0, %s134
    %s149 = sphi 0, %s135
    %s153 = sphi 0, %s153
    %s155 = sphi 0, %s153
    %s156 = sphi 0, %s155
    %s170 = sphi 0, %s156
    %s174 = sphi 0, %s174
    %s176 = sphi 0, %s174
    %s177 = sphi 0, %s176
    %s191 = sphi 0, %s177
    %s197 = sphi 0, %s199
    %s200 = sphi 0, %s197
    %s201 = sphi 0, %s200
    %s217 = sphi 0, %s201
  $region4: #{rel_learnable_attn_forward.1} parent=0 // loop_header_branch
    %17 = sbr.rel (%p15) target = $region8
  $region5: #{rel_learnable_attn_forward.1} parent=0 // loop_body
    %s19 = ssub.s32 %s14, 1
    %s20 = ssub.s32 %s14, 2
    %s21 = sadd.s32 %s14, 1
    %s22 = ssub.s32 %s14, %s21
    %p23 = scmp.eq.s32.totalorder %s22, 0
    %s25 = sadd.s32 %s24, 1
    %s26 = scalar_select %p23, %s24, %s25
    %p29 = pneg %p23
    %p30 = scmp.eq.s32.totalorder %s14, 1
    %p31 = por %p29, %p30
    %p32 = scmp.ne.s32.totalorder %s24, %s27
    %p33 = scmp.eq.s32.totalorder %s14, 0
    %p34 = por %p32, %p33
    %p35 = scmp.ne.s32.totalorder %s24, %s27
    %p36 = scmp.eq.s32.totalorder %s19, 1
    %p37 = por %p35, %p36
    %p38 = scmp.ne.s32.totalorder %s27, %s28
    %p39 = scmp.eq.s32.totalorder %s19, 0
    %p40 = por %p38, %p39
    %p41 = scmp.ne.s32.totalorder %s27, %s28
    %p42 = scmp.eq.s32.totalorder %s20, 1
    %p43 = por %p41, %p42
    %p45 = scmp.ne.s32.totalorder %s28, %s44
    %p46 = scmp.eq.s32.totalorder %s20, 0
    %p47 = por %p45, %p46
    %s49 = sadd.s32 %s48, 1
    %p52 = scmp.eq.s32.totalorder %s14, 1
    %p53 = scmp.ne.s32.totalorder %s48, %s50
    %p54 = scmp.eq.s32.totalorder %s14, 0
    %p55 = por %p53, %p54
    %p56 = scmp.ne.s32.totalorder %s48, %s50
    %p57 = scmp.eq.s32.totalorder %s19, 1
    %p58 = por %p56, %p57
    %p59 = scmp.ne.s32.totalorder %s50, %s51
    %p60 = scmp.eq.s32.totalorder %s19, 0
    %p61 = por %p59, %p60
    %p62 = scmp.ne.s32.totalorder %s50, %s51
    %p63 = scmp.eq.s32.totalorder %s20, 1
    %p64 = por %p62, %p63
    %p66 = scmp.ne.s32.totalorder %s51, %s65
    %p67 = scmp.eq.s32.totalorder %s20, 0
    %p68 = por %p66, %p67
    %s70 = sadd.s32 %s69, 1
    %p73 = scmp.eq.s32.totalorder %s14, 1
    %p74 = scmp.ne.s32.totalorder %s69, %s71
    %p75 = scmp.eq.s32.totalorder %s14, 0
    %p76 = por %p74, %p75
    %p77 = scmp.ne.s32.totalorder %s69, %s71
    %p78 = scmp.eq.s32.totalorder %s19, 1
    %p79 = por %p77, %p78
    %p80 = scmp.ne.s32.totalorder %s71, %s72
    %p81 = scmp.eq.s32.totalorder %s19, 0
    %p82 = por %p80, %p81
    %p83 = scmp.ne.s32.totalorder %s71, %s72
    %p84 = scmp.eq.s32.totalorder %s20, 1
    %p85 = por %p83, %p84
    %p87 = scmp.ne.s32.totalorder %s72, %s86
    %p88 = scmp.eq.s32.totalorder %s20, 0
    %p89 = por %p87, %p88
    %s91 = sadd.s32 %s90, 1
    %p94 = scmp.eq.s32.totalorder %s14, 1
    %p95 = scmp.ne.s32.totalorder %s90, %s92
    %p96 = scmp.eq.s32.totalorder %s14, 0
    %p97 = por %p95, %p96
    %p98 = scmp.ne.s32.totalorder %s90, %s92
    %p99 = scmp.eq.s32.totalorder %s19, 1
    %p100 = por %p98, %p99
    %p101 = scmp.ne.s32.totalorder %s92, %s93
    %p102 = scmp.eq.s32.totalorder %s19, 0
    %p103 = por %p101, %p102
    %p104 = scmp.ne.s32.totalorder %s92, %s93
    %p105 = scmp.eq.s32.totalorder %s20, 1
    %p106 = por %p104, %p105
    %p108 = scmp.ne.s32.totalorder %s93, %s107
    %p109 = scmp.eq.s32.totalorder %s20, 0
    %p110 = por %p108, %p109
    %s112 = sadd.s32 %s111, 1
    %p115 = scmp.eq.s32.totalorder %s14, 1
    %p116 = scmp.ne.s32.totalorder %s111, %s113
    %p117 = scmp.eq.s32.totalorder %s14, 0
    %p118 = por %p116, %p117
    %p119 = scmp.ne.s32.totalorder %s111, %s113
    %p120 = scmp.eq.s32.totalorder %s19, 1
    %p121 = por %p119, %p120
    %p122 = scmp.ne.s32.totalorder %s113, %s114
    %p123 = scmp.eq.s32.totalorder %s19, 0
    %p124 = por %p122, %p123
    %p125 = scmp.ne.s32.totalorder %s113, %s114
    %p126 = scmp.eq.s32.totalorder %s20, 1
    %p127 = por %p125, %p126
    %p129 = scmp.ne.s32.totalorder %s114, %s128
    %p130 = scmp.eq.s32.totalorder %s20, 0
    %p131 = por %p129, %p130
    %s133 = sadd.s32 %s132, 1
    %p136 = scmp.eq.s32.totalorder %s14, 1
    %p137 = scmp.ne.s32.totalorder %s132, %s134
    %p138 = scmp.eq.s32.totalorder %s14, 0
    %p139 = por %p137, %p138
    %p140 = scmp.ne.s32.totalorder %s132, %s134
    %p141 = scmp.eq.s32.totalorder %s19, 1
    %p142 = por %p140, %p141
    %p143 = scmp.ne.s32.totalorder %s134, %s135
    %p144 = scmp.eq.s32.totalorder %s19, 0
    %p145 = por %p143, %p144
    %p146 = scmp.ne.s32.totalorder %s134, %s135
    %p147 = scmp.eq.s32.totalorder %s20, 1
    %p148 = por %p146, %p147
    %p150 = scmp.ne.s32.totalorder %s135, %s149
    %p151 = scmp.eq.s32.totalorder %s20, 0
    %p152 = por %p150, %p151
    %s154 = sadd.s32 %s153, 1
    %p157 = scmp.eq.s32.totalorder %s14, 1
    %p158 = scmp.ne.s32.totalorder %s153, %s155
    %p159 = scmp.eq.s32.totalorder %s14, 0
    %p160 = por %p158, %p159
    %p161 = scmp.ne.s32.totalorder %s153, %s155
    %p162 = scmp.eq.s32.totalorder %s19, 1
    %p163 = por %p161, %p162
    %p164 = scmp.ne.s32.totalorder %s155, %s156
    %p165 = scmp.eq.s32.totalorder %s19, 0
    %p166 = por %p164, %p165
    %p167 = scmp.ne.s32.totalorder %s155, %s156
    %p168 = scmp.eq.s32.totalorder %s20, 1
    %p169 = por %p167, %p168
    %p171 = scmp.ne.s32.totalorder %s156, %s170
    %p172 = scmp.eq.s32.totalorder %s20, 0
    %p173 = por %p171, %p172
    %s175 = sadd.s32 %s174, 1
    %p178 = scmp.eq.s32.totalorder %s14, 1
    %p179 = scmp.ne.s32.totalorder %s174, %s176
    %p180 = scmp.eq.s32.totalorder %s14, 0
    %p181 = por %p179, %p180
    %p182 = scmp.ne.s32.totalorder %s174, %s176
    %p183 = scmp.eq.s32.totalorder %s19, 1
    %p184 = por %p182, %p183
    %p185 = scmp.ne.s32.totalorder %s176, %s177
    %p186 = scmp.eq.s32.totalorder %s19, 0
    %p187 = por %p185, %p186
    %p188 = scmp.ne.s32.totalorder %s176, %s177
    %p189 = scmp.eq.s32.totalorder %s20, 1
    %p190 = por %p188, %p189
    %p192 = scmp.ne.s32.totalorder %s177, %s191
    %p193 = scmp.eq.s32.totalorder %s20, 0
    %p194 = por %p192, %p193
    %s195 = ssub.s32 %s14, %s21
    %p196 = scmp.eq.s32.totalorder %s195, 0
    %s198 = sadd.s32 %s197, 1
    %s199 = scalar_select %p196, %s197, %s198
    %p202 = pneg %p196
    %p203 = scmp.eq.s32.totalorder %s14, 1
    %p204 = por %p202, %p203
    %p205 = scmp.ne.s32.totalorder %s197, %s200
    %p206 = scmp.eq.s32.totalorder %s14, 0
    %p207 = por %p205, %p206
    %p208 = scmp.ne.s32.totalorder %s197, %s200
    %p209 = scmp.eq.s32.totalorder %s19, 1
    %p210 = por %p208, %p209
    %p211 = scmp.ne.s32.totalorder %s200, %s201
    %p212 = scmp.eq.s32.totalorder %s19, 0
    %p213 = por %p211, %p212
    %p214 = scmp.ne.s32.totalorder %s200, %s201
    %p215 = scmp.eq.s32.totalorder %s20, 1
    %p216 = por %p214, %p215
    %p218 = scmp.ne.s32.totalorder %s201, %s217
    %p219 = scmp.eq.s32.totalorder %s20, 0
    %p220 = por %p218, %p219
    %p221 = scmp.le.s32.totalorder 1, %s14
    %p222 = scmp.lt.s32.totalorder %s14, 3
    %p223 = pnand %p221, %p222
    %p224 = pneg %p223
    // Predicated region
    $region9: #{rel_learnable_attn_forward.1} parent=5 // pred_check
      _
    $region10: #{rel_learnable_attn_forward.1} parent=5 // pred_check_branch
      %226 = sbr.rel (%p223) target = $region12
    $region11: #{rel_learnable_attn_forward.1} parent=5 // pred_region
      %s227 = ssub.s32 %s14, 1
      // Predicated region
      $region13: #{rel_learnable_attn_forward.1} parent=11 // pred_check
        %p228 = pneg %p61
      $region14: #{rel_learnable_attn_forward.1} parent=11 // pred_check_branch
        %230 = sbr.rel (%p228) target = $region16
      $region15: #{rel_learnable_attn_forward.1} parent=11 // pred_region
        _
      $region16: #{rel_learnable_attn_forward.1} parent=11 // pred_fallthru
        _
      // Predicated region
      $region17: #{rel_learnable_attn_forward.1} parent=11 // pred_check
        %p231 = pneg %p82
      $region18: #{rel_learnable_attn_forward.1} parent=11 // pred_check_branch
        %233 = sbr.rel (%p231) target = $region20
      $region19: #{rel_learnable_attn_forward.1} parent=11 // pred_region
        _
      $region20: #{rel_learnable_attn_forward.1} parent=11 // pred_fallthru
        _
      // Predicated region
      $region21: #{rel_learnable_attn_forward.1} parent=11 // pred_check
        %p234 = pneg %p103
      $region22: #{rel_learnable_attn_forward.1} parent=11 // pred_check_branch
        %236 = sbr.rel (%p234) target = $region24
      $region23: #{rel_learnable_attn_forward.1} parent=11 // pred_region
        _
      $region24: #{rel_learnable_attn_forward.1} parent=11 // pred_fallthru
        _
      // Predicated region
      $region25: #{rel_learnable_attn_forward.1} parent=11 // pred_check
        %p237 = pneg %p124
      $region26: #{rel_learnable_attn_forward.1} parent=11 // pred_check_branch
        %239 = sbr.rel (%p237) target = $region28
      $region27: #{rel_learnable_attn_forward.1} parent=11 // pred_region
        _
      $region28: #{rel_learnable_attn_forward.1} parent=11 // pred_fallthru
        _
      // Predicated region
      $region29: #{rel_learnable_attn_forward.1} parent=11 // pred_check
        %p240 = pneg %p145
      $region30: #{rel_learnable_attn_forward.1} parent=11 // pred_check_branch
        %242 = sbr.rel (%p240) target = $region32
      $region31: #{rel_learnable_attn_forward.1} parent=11 // pred_region
        _
      $region32: #{rel_learnable_attn_forward.1} parent=11 // pred_fallthru
        _
      // Predicated region
      $region33: #{rel_learnable_attn_forward.1} parent=11 // pred_check
        %p243 = pneg %p166
      $region34: #{rel_learnable_attn_forward.1} parent=11 // pred_check_branch
        %245 = sbr.rel (%p243) target = $region36
      $region35: #{rel_learnable_attn_forward.1} parent=11 // pred_region
        _
      $region36: #{rel_learnable_attn_forward.1} parent=11 // pred_fallthru
        _
      // Predicated region
      $region37: #{rel_learnable_attn_forward.1} parent=11 // pred_check
        %p246 = pneg %p187
      $region38: #{rel_learnable_attn_forward.1} parent=11 // pred_check_branch
        %248 = sbr.rel (%p246) target = $region40
      $region39: #{rel_learnable_attn_forward.1} parent=11 // pred_region
        _
      $region40: #{rel_learnable_attn_forward.1} parent=11 // pred_fallthru
        _
    $region12: #{rel_learnable_attn_forward.1} parent=5 // pred_fallthru
      _
    %p249 = scmp.lt.s32.totalorder %s14, 2
    // Predicated region
    $region41: #{rel_learnable_attn_forward.1} parent=5 // pred_check
      %p250 = pneg %p249
    $region42: #{rel_learnable_attn_forward.1} parent=5 // pred_check_branch
      %252 = sbr.rel (%p250) target = $region44
    $region43: #{rel_learnable_attn_forward.1} parent=5 // pred_region
      // Predicated region
      $region45: #{rel_learnable_attn_forward.1} parent=43 // pred_check
        %p253 = pneg %p34
      $region46: #{rel_learnable_attn_forward.1} parent=43 // pred_check_branch
        %255 = sbr.rel (%p253) target = $region48
      $region47: #{rel_learnable_attn_forward.1} parent=43 // pred_region
        %p256 = scmp.lt.s32.totalorder %s14, 1
        %s257 = scalar_select %p256, %s14, 1
        %s258 = smul.addr %s257, 8
        %s259 = scalar_lea.vmem %s0, %s258
      $region48: #{rel_learnable_attn_forward.1} parent=43 // pred_fallthru
        _
    $region44: #{rel_learnable_attn_forward.1} parent=5 // pred_fallthru
      _
    %p260 = scmp.le.s32.totalorder 1, %s14
    %p261 = scmp.lt.s32.totalorder %s14, 3
    %p262 = pnand %p260, %p261
    %p263 = pneg %p262
    // Predicated region
    $region49: #{rel_learnable_attn_forward.1} parent=5 // pred_check
      _
    $region50: #{rel_learnable_attn_forward.1} parent=5 // pred_check_branch
      %265 = sbr.rel (%p262) target = $region52
    $region51: #{rel_learnable_attn_forward.1} parent=5 // pred_region
      %s266 = ssub.s32 %s14, 1
      %p267 = scmp.lt.s32.totalorder %s19, 1
      %s268 = scalar_select %p267, %s19, 1
      %s269 = smul.addr %s268, 8
      %s270 = scalar_lea.vmem %s0, %s269
      %p271 = pneg %p40
      %p272 = pneg %p37
      %p273 = pneg %p61
      %p274 = pneg %p58
      %p275 = pneg %p82
      %p276 = pneg %p79
      %p277 = pneg %p103
      %p278 = pneg %p100
      %p279 = pneg %p124
      %p280 = pneg %p121
      %p281 = pneg %p145
      %p282 = pneg %p142
      %p283 = pneg %p166
      %p284 = pneg %p163
      %p285 = pneg %p187
      %p286 = pneg %p184
      %p287 = pneg %p213
      %p288 = pneg %p210
      %p289 = scmp.lt.s32.totalorder %s19, 1
      %s290 = scalar_select %p289, %s19, 1
      %s291 = smul.addr %s290, 8
      %s292 = scalar_lea.vmem %s8, %s291
      %p293 = scmp.lt.s32.totalorder %s19, 1
      %s294 = scalar_select %p293, %s19, 1
      %s295 = smul.addr %s294, 8
      %s296 = scalar_lea.vmem %s0, %s295
      %p297 = scmp.lt.s32.totalorder %s19, 1
      %s298 = scalar_select %p297, %s19, 1
      %s299 = smul.addr %s298, 8
      %s300 = scalar_lea.vmem %s8, %s299
      %v301 = vld [vmem:[%s296] sm:$0xff]
      %v302 = vld [vmem:[%s4] sm:$0xff]
      %v303 = vld [vmem:[%s4 + $0x8] sm:$0xff]
      %v304 = vld [vmem:[%s4 + $0x10] sm:$0xff]
      %v305 = vld [vmem:[%s4 + $0x18] sm:$0xff]
      %v306 = vld [vmem:[%s5] sm:$0xff]
      %v307 = vld [vmem:[%s5 + $0x8] sm:$0xff]
      %v308 = vld [vmem:[%s5 + $0x10] sm:$0xff]
      %v309 = vld [vmem:[%s5 + $0x18] sm:$0xff]
      %v310 = vld [vmem:[%s3] sm:$0x3]
      %v311 = vld [vmem:[%s2] sm:$0x3]
      %v312 = vld [vmem:[%s1] sm:$0xff]
      %v313 = vld [vmem:[%s1 + $0x8] sm:$0xff]
      %v314 = vld [vmem:[%s1 + $0x10] sm:$0xff]
      %v315 = vld [vmem:[%s1 + $0x18] sm:$0xff]
      %v316 = vld [vmem:[%s1 + $0x20] sm:$0xff]
      %v317 = vld [vmem:[%s1 + $0x28] sm:$0xff]
      %v318 = vld [vmem:[%s1 + $0x30] sm:$0xff]
      %v319 = vld [vmem:[%s1 + $0x38] sm:$0xff]
      %v320 = vld [vmem:[%s1 + $0x40] sm:$0xff]
      %v321 = vld [vmem:[%s1 + $0x48] sm:$0xff]
      %v322 = vld [vmem:[%s1 + $0x50] sm:$0xff]
      %v323 = vld [vmem:[%s1 + $0x58] sm:$0xff]
      %v324 = vld [vmem:[%s1 + $0x60] sm:$0xff]
      %v325 = vld [vmem:[%s1 + $0x68] sm:$0xff]
      %v326 = vld [vmem:[%s1 + $0x70] sm:$0xff]
      %v327 = vld [vmem:[%s1 + $0x78] sm:$0xff]
      %v328 = vld [vmem:[%s1 + $0x80] sm:$0xff]
      %v329 = vld [vmem:[%s1 + $0x88] sm:$0xff]
      %v330 = vld [vmem:[%s1 + $0x90] sm:$0xff]
      %v331 = vld [vmem:[%s1 + $0x98] sm:$0xff]
      %v332 = vld [vmem:[%s1 + $0xa0] sm:$0xff]
      %v333 = vld [vmem:[%s1 + $0xa8] sm:$0xff]
      %v334 = vld [vmem:[%s1 + $0xb0] sm:$0xff]
      %v335 = vld [vmem:[%s1 + $0xb8] sm:$0xff]
      %v336 = vld [vmem:[%s1 + $0xc0] sm:$0xff]
      %v337 = vld [vmem:[%s1 + $0xc8] sm:$0xff]
      %v338 = vld [vmem:[%s1 + $0xd0] sm:$0xff]
      %v339 = vld [vmem:[%s1 + $0xd8] sm:$0xff]
      %v340 = vld [vmem:[%s1 + $0xe0] sm:$0xff]
      %v341 = vld [vmem:[%s1 + $0xe8] sm:$0xff]
      %v342 = vld [vmem:[%s1 + $0xf0] sm:$0xff]
      %v343 = vld [vmem:[%s1 + $0xf8] sm:$0xff]
      %vm344 = vcmask 261120
      %v346 = vsel %vm344, %v301, 0
      %348 = vmatprep.subr.mxu0 0.0
      %349 = vmatpush1.msra.mxu0 0.0
      %350 = vmatprep.subr.mxu0 0.0
      %351 = vmatpush1.msra.mxu0 0.0
      %352 = vmatprep.subr.mxu0 0.0
      %353 = vmatpush1.msra.mxu0 0.0
      %354 = vmatprep.subr.mxu0 0.0
      %355 = vmatpush1.msra.mxu0 0.0
      %356 = vmatprep.subr.mxu0 0.0
      %357 = vmatpush1.msra.mxu0 0.0
      %358 = vmatprep.subr.mxu0 0.0
      %359 = vmatpush1.msra.mxu0 0.0
      %360 = vmatprep.subr.mxu0 0.0
      %361 = vmatpush1.msra.mxu0 0.0
      %362 = vmatprep.subr.mxu0 0.0
      %363 = vmatpush1.msra.mxu0 0.0
      %364 = vmatprep.subr.mxu0 0.0
      %365 = vmatpush1.msra.mxu0 0.0
      %366 = vmatprep.subr.mxu0 0.0
      %367 = vmatpush1.msra.mxu0 0.0
      %368 = vmatprep.subr.mxu0 0.0
      %369 = vmatpush1.msra.mxu0 0.0
      %370 = vmatprep.subr.mxu0 0.0
      %371 = vmatpush1.msra.mxu0 0.0
      %372 = vmatprep.subr.mxu0 0.0
      %373 = vmatpush1.msra.mxu0 %v305
      %374 = vmatprep.subr.mxu0 0.0
      %375 = vmatpush1.msra.mxu0 %v304
      %376 = vmatprep.subr.mxu0 0.0
      %377 = vmatpush1.msra.mxu0 %v303
      %378 = vmatprep.subr.mxu0 0.0
      %379 = vmatpush1.msra.mxu0 %v302
      %380 = vmatprep.subr.mxu0 0.0
      %381 = vmatpush2.msra.mxu0 0.0
      %382 = vmatprep.subr.mxu0 0.0
      %383 = vmatpush2.msra.mxu0 0.0
      %384 = vmatprep.subr.mxu0 0.0
      %385 = vmatpush2.msra.mxu0 0.0
      %386 = vmatprep.subr.mxu0 0.0
      %387 = vmatpush2.msra.mxu0 0.0
      %388 = vmatprep.subr.mxu0 0.0
      %389 = vmatpush2.msra.mxu0 0.0
      %390 = vmatprep.subr.mxu0 0.0
      %391 = vmatpush2.msra.mxu0 0.0
      %392 = vmatprep.subr.mxu0 0.0
      %393 = vmatpush2.msra.mxu0 0.0
      %394 = vmatprep.subr.mxu0 0.0
      %395 = vmatpush2.msra.mxu0 0.0
      %396 = vmatprep.subr.mxu0 0.0
      %397 = vmatpush2.msra.mxu0 0.0
      %398 = vmatprep.subr.mxu0 0.0
      %399 = vmatpush2.msra.mxu0 0.0
      %400 = vmatprep.subr.mxu0 0.0
      %401 = vmatpush2.msra.mxu0 0.0
      %402 = vmatprep.subr.mxu0 0.0
      %403 = vmatpush2.msra.mxu0 0.0
      %404 = vmatprep.subr.mxu0 0.0
      %405 = vmatpush2.msra.mxu0 0.0
      %406 = vmatprep.subr.mxu0 0.0
      %407 = vmatpush2.msra.mxu0 0.0
      %408 = vmatprep.subr.mxu0 0.0
      %409 = vmatpush2.msra.mxu0 0.0
      %410 = vmatprep.subr.mxu0 0.0
      %411 = vmatpush2.msra.mxu0 0.0
      %412 = vmatprep.mubr.f32.mxu0 0.0
      %413 = vmatmul.mubr.f32.gmra.mxu0 %v346
      %v414 = vpop.f32.mrf.mxu0
      %v415 = vadd.f32 0.0, %v414
      %v416 = vpop.f32.mrf.mxu0
      %417 = vdwg.mxu0
      %v418 = vlaneseq
      %v419 = vshrl.u32 %v418, 7
      %v420 = vlaneseq
      %v421 = vand.u32 %v420, 127
      %vm422 = vcmp.le.s32.totalorder %v421, %v419
      %v423 = vadd.s32 %v419, 2
      %vm424 = vcmp.ge.s32.totalorder %v421, %v423
      %v425 = vlaneseq
      %v426 = vshrl.u32 %v425, 7
      %v427 = vsub.s32 0, %v426
      %v428 = vrot.slane %v310, %v427
      %v429 = vadd.f32 %v415, %v428
      %v430 = vlaneseq
      %v431 = vshrl.u32 %v430, 7
      %v432 = vsub.s32 0, %v431
      %v433 = vrot.slane %v311, %v432
      %vm434 = vcmask 130048
      %v436 = vsel %vm434, %v415, 0
      %v439 = vsel %vm434, %v312, 0
      %v442 = vsel %vm434, %v313, 0
      %v445 = vsel %vm434, %v314, 0
      %v448 = vsel %vm434, %v315, 0
      %v451 = vsel %vm434, %v316, 0
      %v454 = vsel %vm434, %v317, 0
      %v457 = vsel %vm434, %v318, 0
      %v460 = vsel %vm434, %v319, 0
      %v463 = vsel %vm434, %v320, 0
      %v466 = vsel %vm434, %v321, 0
      %v469 = vsel %vm434, %v322, 0
      %v472 = vsel %vm434, %v323, 0
      %v475 = vsel %vm434, %v324, 0
      %v478 = vsel %vm434, %v325, 0
      %v481 = vsel %vm434, %v326, 0
      %v484 = vsel %vm434, %v327, 0
      %486 = vmatprep.subr.mxu0 0.0
      %487 = vmatpush1.xpose.msra.mxu0 %v484
      %488 = vmatprep.subr.mxu0 0.0
      %489 = vmatpush1.xpose.msra.mxu0 %v481
      %490 = vmatprep.subr.mxu0 0.0
      %491 = vmatpush1.xpose.msra.mxu0 %v478
      %492 = vmatprep.subr.mxu0 0.0
      %493 = vmatpush1.xpose.msra.mxu0 %v475
      %494 = vmatprep.subr.mxu0 0.0
      %495 = vmatpush1.xpose.msra.mxu0 %v472
      %496 = vmatprep.subr.mxu0 0.0
      %497 = vmatpush1.xpose.msra.mxu0 %v469
      %498 = vmatprep.subr.mxu0 0.0
      %499 = vmatpush1.xpose.msra.mxu0 %v466
      %500 = vmatprep.subr.mxu0 0.0
      %501 = vmatpush1.xpose.msra.mxu0 %v463
      %502 = vmatprep.subr.mxu0 0.0
      %503 = vmatpush1.xpose.msra.mxu0 %v460
      %504 = vmatprep.subr.mxu0 0.0
      %505 = vmatpush1.xpose.msra.mxu0 %v457
      %506 = vmatprep.subr.mxu0 0.0
      %507 = vmatpush1.xpose.msra.mxu0 %v454
      %508 = vmatprep.subr.mxu0 0.0
      %509 = vmatpush1.xpose.msra.mxu0 %v451
      %510 = vmatprep.subr.mxu0 0.0
      %511 = vmatpush1.xpose.msra.mxu0 %v448
      %512 = vmatprep.subr.mxu0 0.0
      %513 = vmatpush1.xpose.msra.mxu0 %v445
      %514 = vmatprep.subr.mxu0 0.0
      %515 = vmatpush1.xpose.msra.mxu0 %v442
      %516 = vmatprep.subr.mxu0 0.0
      %517 = vmatpush1.xpose.msra.mxu0 %v439
      %518 = vmatprep.subr.mxu0 0.0
      %519 = vmatpush2.xpose.msra.mxu0 0.0
      %520 = vmatprep.subr.mxu0 0.0
      %521 = vmatpush2.xpose.msra.mxu0 0.0
      %522 = vmatprep.subr.mxu0 0.0
      %523 = vmatpush2.xpose.msra.mxu0 0.0
      %524 = vmatprep.subr.mxu0 0.0
      %525 = vmatpush2.xpose.msra.mxu0 0.0
      %526 = vmatprep.subr.mxu0 0.0
      %527 = vmatpush2.xpose.msra.mxu0 0.0
      %528 = vmatprep.subr.mxu0 0.0
      %529 = vmatpush2.xpose.msra.mxu0 0.0
      %530 = vmatprep.subr.mxu0 0.0
      %531 = vmatpush2.xpose.msra.mxu0 0.0
      %532 = vmatprep.subr.mxu0 0.0
      %533 = vmatpush2.xpose.msra.mxu0 0.0
      %534 = vmatprep.subr.mxu0 0.0
      %535 = vmatpush2.xpose.msra.mxu0 0.0
      %536 = vmatprep.subr.mxu0 0.0
      %537 = vmatpush2.xpose.msra.mxu0 0.0
      %538 = vmatprep.subr.mxu0 0.0
      %539 = vmatpush2.xpose.msra.mxu0 0.0
      %540 = vmatprep.subr.mxu0 0.0
      %541 = vmatpush2.xpose.msra.mxu0 0.0
      %542 = vmatprep.subr.mxu0 0.0
      %543 = vmatpush2.xpose.msra.mxu0 0.0
      %544 = vmatprep.subr.mxu0 0.0
      %545 = vmatpush2.xpose.msra.mxu0 0.0
      %546 = vmatprep.subr.mxu0 0.0
      %547 = vmatpush2.xpose.msra.mxu0 0.0
      %548 = vmatprep.subr.mxu0 0.0
      %549 = vmatpush2.xpose.msra.mxu0 0.0
      %550 = vmatprep.mubr.f32.mxu0 0.0
      %551 = vmatmul.mubr.f32.gmra.mxu0 %v436
      %v552 = vpop.f32.mrf.mxu0
      %v553 = vadd.f32 %v433, %v552
      %v554 = vpop.f32.mrf.mxu0
      %555 = vdwg.mxu0
      %s557 = sor.u32 256, 1
      %558 = vrot.lane.b32.xlu0 %v553, %s557
      %v559 = vpop.permute.xlu0 %558
      %v560 = vrot.slane %v559, 1
      %v561 = vsel %vm424, %v560, 0.0
      %v562 = vsel %vm422, %v559, %v561
      %563 = vrot.lane.b32.xlu0 %v415, 96
      %v564 = vpop.permute.xlu0 %563
      %v566 = vsel %vm434, %v429, 0
      %v568 = vsel %vm434, %v564, 0
      %570 = vmatprep.subr.mxu0 0.0
      %571 = vmatpush1.xpose.msra.mxu0 0.0
      %572 = vmatprep.subr.mxu0 0.0
      %573 = vmatpush1.xpose.msra.mxu0 0.0
      %574 = vmatprep.subr.mxu0 0.0
      %575 = vmatpush1.xpose.msra.mxu0 0.0
      %576 = vmatprep.subr.mxu0 0.0
      %577 = vmatpush1.xpose.msra.mxu0 0.0
      %578 = vmatprep.subr.mxu0 0.0
      %579 = vmatpush1.xpose.msra.mxu0 0.0
      %580 = vmatprep.subr.mxu0 0.0
      %581 = vmatpush1.xpose.msra.mxu0 0.0
      %582 = vmatprep.subr.mxu0 0.0
      %583 = vmatpush1.xpose.msra.mxu0 0.0
      %584 = vmatprep.subr.mxu0 0.0
      %585 = vmatpush1.xpose.msra.mxu0 0.0
      %586 = vmatprep.subr.mxu0 0.0
      %587 = vmatpush1.xpose.msra.mxu0 0.0
      %588 = vmatprep.subr.mxu0 0.0
      %589 = vmatpush1.xpose.msra.mxu0 0.0
      %590 = vmatprep.subr.mxu0 0.0
      %591 = vmatpush1.xpose.msra.mxu0 0.0
      %592 = vmatprep.subr.mxu0 0.0
      %593 = vmatpush1.xpose.msra.mxu0 0.0
      %594 = vmatprep.subr.mxu0 0.0
      %595 = vmatpush1.xpose.msra.mxu0 0.0
      %596 = vmatprep.subr.mxu0 0.0
      %597 = vmatpush1.xpose.msra.mxu0 0.0
      %598 = vmatprep.subr.mxu0 0.0
      %599 = vmatpush1.xpose.msra.mxu0 0.0
      %600 = vmatprep.subr.mxu0 0.0
      %601 = vmatpush1.xpose.msra.mxu0 %v568
      %602 = vmatprep.subr.mxu0 0.0
      %603 = vmatpush2.xpose.msra.mxu0 0.0
      %604 = vmatprep.subr.mxu0 0.0
      %605 = vmatpush2.xpose.msra.mxu0 0.0
      %606 = vmatprep.subr.mxu0 0.0
      %607 = vmatpush2.xpose.msra.mxu0 0.0
      %608 = vmatprep.subr.mxu0 0.0
      %609 = vmatpush2.xpose.msra.mxu0 0.0
      %610 = vmatprep.subr.mxu0 0.0
      %611 = vmatpush2.xpose.msra.mxu0 0.0
      %612 = vmatprep.subr.mxu0 0.0
      %613 = vmatpush2.xpose.msra.mxu0 0.0
      %614 = vmatprep.subr.mxu0 0.0
      %615 = vmatpush2.xpose.msra.mxu0 0.0
      %616 = vmatprep.subr.mxu0 0.0
      %617 = vmatpush2.xpose.msra.mxu0 0.0
      %618 = vmatprep.subr.mxu0 0.0
      %619 = vmatpush2.xpose.msra.mxu0 0.0
      %620 = vmatprep.subr.mxu0 0.0
      %621 = vmatpush2.xpose.msra.mxu0 0.0
      %622 = vmatprep.subr.mxu0 0.0
      %623 = vmatpush2.xpose.msra.mxu0 0.0
      %624 = vmatprep.subr.mxu0 0.0
      %625 = vmatpush2.xpose.msra.mxu0 0.0
      %626 = vmatprep.subr.mxu0 0.0
      %627 = vmatpush2.xpose.msra.mxu0 0.0
      %628 = vmatprep.subr.mxu0 0.0
      %629 = vmatpush2.xpose.msra.mxu0 0.0
      %630 = vmatprep.subr.mxu0 0.0
      %631 = vmatpush2.xpose.msra.mxu0 0.0
      %632 = vmatprep.subr.mxu0 0.0
      %633 = vmatpush2.xpose.msra.mxu0 0.0
      %634 = vmatprep.mubr.f32.mxu0 0.0
      %635 = vmatmul.mubr.f32.gmra.mxu0 %v566
      %v636 = vpop.f32.mrf.mxu0
      %v637 = vadd.f32 %v562, %v636
      %v638 = vpop.f32.mrf.mxu0
      %639 = vdwg.mxu0
      %v640 = vmul.f32 %v637, 0.25
      %vm641 = vcmask 64512
      %v642 = vsel %vm641, %v640, -inf
      %643 = vmax.xlane.f32.xlu0 %v642
      %v644 = vpop.xlane.xlu0 %643
      %v645 = vsub.f32 %v640, %v644
      %v646 = vmul.f32 %v645, 1.442695
      %v647 = vpow.pop %v646
      %v648 = vsel %vm641, %v647, 0.0
      %649 = vadd.xlane.f32.xlu0 %v648
      %v650 = vpop.xlane.xlu0 %649
      %v651 = vrcp.pop %v650
      %v652 = vmul.f32 %v647, %v651
      %653 = vrot.lane.b32.xlu0 %v415, 64
      %v654 = vpop.permute.xlu0 %653
      %v657 = vsel %vm641, %v652, 0
      %659 = vmatprep.subr.mxu0 0.0
      %660 = vmatpush1.msra.mxu0 0.0
      %661 = vmatprep.subr.mxu0 0.0
      %662 = vmatpush1.msra.mxu0 0.0
      %663 = vmatprep.subr.mxu0 0.0
      %664 = vmatpush1.msra.mxu0 0.0
      %665 = vmatprep.subr.mxu0 0.0
      %666 = vmatpush1.msra.mxu0 0.0
      %667 = vmatprep.subr.mxu0 0.0
      %668 = vmatpush1.msra.mxu0 0.0
      %669 = vmatprep.subr.mxu0 0.0
      %670 = vmatpush1.msra.mxu0 0.0
      %671 = vmatprep.subr.mxu0 0.0
      %672 = vmatpush1.msra.mxu0 0.0
      %673 = vmatprep.subr.mxu0 0.0
      %674 = vmatpush1.msra.mxu0 0.0
      %675 = vmatprep.subr.mxu0 0.0
      %676 = vmatpush1.msra.mxu0 0.0
      %677 = vmatprep.subr.mxu0 0.0
      %678 = vmatpush1.msra.mxu0 0.0
      %679 = vmatprep.subr.mxu0 0.0
      %680 = vmatpush1.msra.mxu0 0.0
      %681 = vmatprep.subr.mxu0 0.0
      %682 = vmatpush1.msra.mxu0 0.0
      %683 = vmatprep.subr.mxu0 0.0
      %684 = vmatpush1.msra.mxu0 0.0
      %685 = vmatprep.subr.mxu0 0.0
      %686 = vmatpush1.msra.mxu0 0.0
      %687 = vmatprep.subr.mxu0 0.0
      %688 = vmatpush1.msra.mxu0 0.0
      %689 = vmatprep.subr.mxu0 0.0
      %690 = vmatpush1.msra.mxu0 %v654
      %691 = vmatprep.subr.mxu0 0.0
      %692 = vmatpush2.msra.mxu0 0.0
      %693 = vmatprep.subr.mxu0 0.0
      %694 = vmatpush2.msra.mxu0 0.0
      %695 = vmatprep.subr.mxu0 0.0
      %696 = vmatpush2.msra.mxu0 0.0
      %697 = vmatprep.subr.mxu0 0.0
      %698 = vmatpush2.msra.mxu0 0.0
      %699 = vmatprep.subr.mxu0 0.0
      %700 = vmatpush2.msra.mxu0 0.0
      %701 = vmatprep.subr.mxu0 0.0
      %702 = vmatpush2.msra.mxu0 0.0
      %703 = vmatprep.subr.mxu0 0.0
      %704 = vmatpush2.msra.mxu0 0.0
      %705 = vmatprep.subr.mxu0 0.0
      %706 = vmatpush2.msra.mxu0 0.0
      %707 = vmatprep.subr.mxu0 0.0
      %708 = vmatpush2.msra.mxu0 0.0
      %709 = vmatprep.subr.mxu0 0.0
      %710 = vmatpush2.msra.mxu0 0.0
      %711 = vmatprep.subr.mxu0 0.0
      %712 = vmatpush2.msra.mxu0 0.0
      %713 = vmatprep.subr.mxu0 0.0
      %714 = vmatpush2.msra.mxu0 0.0
      %715 = vmatprep.subr.mxu0 0.0
      %716 = vmatpush2.msra.mxu0 0.0
      %717 = vmatprep.subr.mxu0 0.0
      %718 = vmatpush2.msra.mxu0 0.0
      %719 = vmatprep.subr.mxu0 0.0
      %720 = vmatpush2.msra.mxu0 0.0
      %721 = vmatprep.subr.mxu0 0.0
      %722 = vmatpush2.msra.mxu0 0.0
      %723 = vmatprep.mubr.f32.mxu0 0.0
      %724 = vmatmul.mubr.f32.gmra.mxu0 %v657
      %v725 = vpop.f32.mrf.mxu0
      %v726 = vadd.f32 0.0, %v725
      %v727 = vpop.f32.mrf.mxu0
      %728 = vdwg.mxu0
      %v729 = vlaneseq
      %v730 = vshrl.u32 %v729, 7
      %v731 = vsub.s32 1, %v730
      %v732 = vrot.slane %v310, %v731
      %734 = vrot.lane.b32.xlu0 %v732, 16
      %v735 = vpop.permute.xlu0 %734
      %v737 = vadd.f32 %v415, %v735
      %v738 = vlaneseq
      %v739 = vshrl.u32 %v738, 7
      %v740 = vsub.s32 1, %v739
      %v741 = vrot.slane %v311, %v740
      %742 = vrot.lane.b32.xlu0 %v415, 112
      %v743 = vpop.permute.xlu0 %742
      %v744 = vsel %vm434, %v743, 0
      %v747 = vsel %vm434, %v328, 0
      %v750 = vsel %vm434, %v329, 0
      %v753 = vsel %vm434, %v330, 0
      %v756 = vsel %vm434, %v331, 0
      %v759 = vsel %vm434, %v332, 0
      %v762 = vsel %vm434, %v333, 0
      %v765 = vsel %vm434, %v334, 0
      %v768 = vsel %vm434, %v335, 0
      %v771 = vsel %vm434, %v336, 0
      %v774 = vsel %vm434, %v337, 0
      %v777 = vsel %vm434, %v338, 0
      %v780 = vsel %vm434, %v339, 0
      %v783 = vsel %vm434, %v340, 0
      %v786 = vsel %vm434, %v341, 0
      %v789 = vsel %vm434, %v342, 0
      %v792 = vsel %vm434, %v343, 0
      %794 = vmatprep.subr.mxu0 0.0
      %795 = vmatpush1.xpose.msra.mxu0 %v792
      %796 = vmatprep.subr.mxu0 0.0
      %797 = vmatpush1.xpose.msra.mxu0 %v789
      %798 = vmatprep.subr.mxu0 0.0
      %799 = vmatpush1.xpose.msra.mxu0 %v786
      %800 = vmatprep.subr.mxu0 0.0
      %801 = vmatpush1.xpose.msra.mxu0 %v783
      %802 = vmatprep.subr.mxu0 0.0
      %803 = vmatpush1.xpose.msra.mxu0 %v780
      %804 = vmatprep.subr.mxu0 0.0
      %805 = vmatpush1.xpose.msra.mxu0 %v777
      %806 = vmatprep.subr.mxu0 0.0
      %807 = vmatpush1.xpose.msra.mxu0 %v774
      %808 = vmatprep.subr.mxu0 0.0
      %809 = vmatpush1.xpose.msra.mxu0 %v771
      %810 = vmatprep.subr.mxu0 0.0
      %811 = vmatpush1.xpose.msra.mxu0 %v768
      %812 = vmatprep.subr.mxu0 0.0
      %813 = vmatpush1.xpose.msra.mxu0 %v765
      %814 = vmatprep.subr.mxu0 0.0
      %815 = vmatpush1.xpose.msra.mxu0 %v762
      %816 = vmatprep.subr.mxu0 0.0
      %817 = vmatpush1.xpose.msra.mxu0 %v759
      %818 = vmatprep.subr.mxu0 0.0
      %819 = vmatpush1.xpose.msra.mxu0 %v756
      %820 = vmatprep.subr.mxu0 0.0
      %821 = vmatpush1.xpose.msra.mxu0 %v753
      %822 = vmatprep.subr.mxu0 0.0
      %823 = vmatpush1.xpose.msra.mxu0 %v750
      %824 = vmatprep.subr.mxu0 0.0
      %825 = vmatpush1.xpose.msra.mxu0 %v747
      %826 = vmatprep.subr.mxu0 0.0
      %827 = vmatpush2.xpose.msra.mxu0 0.0
      %828 = vmatprep.subr.mxu0 0.0
      %829 = vmatpush2.xpose.msra.mxu0 0.0
      %830 = vmatprep.subr.mxu0 0.0
      %831 = vmatpush2.xpose.msra.mxu0 0.0
      %832 = vmatprep.subr.mxu0 0.0
      %833 = vmatpush2.xpose.msra.mxu0 0.0
      %834 = vmatprep.subr.mxu0 0.0
      %835 = vmatpush2.xpose.msra.mxu0 0.0
      %836 = vmatprep.subr.mxu0 0.0
      %837 = vmatpush2.xpose.msra.mxu0 0.0
      %838 = vmatprep.subr.mxu0 0.0
      %839 = vmatpush2.xpose.msra.mxu0 0.0
      %840 = vmatprep.subr.mxu0 0.0
      %841 = vmatpush2.xpose.msra.mxu0 0.0
      %842 = vmatprep.subr.mxu0 0.0
      %843 = vmatpush2.xpose.msra.mxu0 0.0
      %844 = vmatprep.subr.mxu0 0.0
      %845 = vmatpush2.xpose.msra.mxu0 0.0
      %846 = vmatprep.subr.mxu0 0.0
      %847 = vmatpush2.xpose.msra.mxu0 0.0
      %848 = vmatprep.subr.mxu0 0.0
      %849 = vmatpush2.xpose.msra.mxu0 0.0
      %850 = vmatprep.subr.mxu0 0.0
      %851 = vmatpush2.xpose.msra.mxu0 0.0
      %852 = vmatprep.subr.mxu0 0.0
      %853 = vmatpush2.xpose.msra.mxu0 0.0
      %854 = vmatprep.subr.mxu0 0.0
      %855 = vmatpush2.xpose.msra.mxu0 0.0
      %856 = vmatprep.subr.mxu0 0.0
      %857 = vmatpush2.xpose.msra.mxu0 0.0
      %858 = vmatprep.mubr.f32.mxu0 0.0
      %859 = vmatmul.mubr.f32.gmra.mxu0 %v744
      %v860 = vpop.f32.mrf.mxu0
      %v861 = vadd.f32 %v741, %v860
      %v862 = vpop.f32.mrf.mxu0
      %863 = vdwg.mxu0
      %s865 = sor.u32 256, 1
      %866 = vrot.lane.b32.xlu0 %v861, %s865
      %v867 = vpop.permute.xlu0 %866
      %v868 = vrot.slane %v867, 1
      %v869 = vsel %vm424, %v868, 0.0
      %v870 = vsel %vm422, %v867, %v869
      %872 = vrot.lane.b32.xlu0 %v737, 112
      %v873 = vpop.permute.xlu0 %872
      %874 = vrot.lane.b32.xlu0 %v415, 80
      %v875 = vpop.permute.xlu0 %874
      %v876 = vsel %vm434, %v873, 0
      %v878 = vsel %vm434, %v875, 0
      %880 = vmatprep.subr.mxu0 0.0
      %881 = vmatpush1.xpose.msra.mxu0 0.0
      %882 = vmatprep.subr.mxu0 0.0
      %883 = vmatpush1.xpose.msra.mxu0 0.0
      %884 = vmatprep.subr.mxu0 0.0
      %885 = vmatpush1.xpose.msra.mxu0 0.0
      %886 = vmatprep.subr.mxu0 0.0
      %887 = vmatpush1.xpose.msra.mxu0 0.0
      %888 = vmatprep.subr.mxu0 0.0
      %889 = vmatpush1.xpose.msra.mxu0 0.0
      %890 = vmatprep.subr.mxu0 0.0
      %891 = vmatpush1.xpose.msra.mxu0 0.0
      %892 = vmatprep.subr.mxu0 0.0
      %893 = vmatpush1.xpose.msra.mxu0 0.0
      %894 = vmatprep.subr.mxu0 0.0
      %895 = vmatpush1.xpose.msra.mxu0 0.0
      %896 = vmatprep.subr.mxu0 0.0
      %897 = vmatpush1.xpose.msra.mxu0 0.0
      %898 = vmatprep.subr.mxu0 0.0
      %899 = vmatpush1.xpose.msra.mxu0 0.0
      %900 = vmatprep.subr.mxu0 0.0
      %901 = vmatpush1.xpose.msra.mxu0 0.0
      %902 = vmatprep.subr.mxu0 0.0
      %903 = vmatpush1.xpose.msra.mxu0 0.0
      %904 = vmatprep.subr.mxu0 0.0
      %905 = vmatpush1.xpose.msra.mxu0 0.0
      %906 = vmatprep.subr.mxu0 0.0
      %907 = vmatpush1.xpose.msra.mxu0 0.0
      %908 = vmatprep.subr.mxu0 0.0
      %909 = vmatpush1.xpose.msra.mxu0 0.0
      %910 = vmatprep.subr.mxu0 0.0
      %911 = vmatpush1.xpose.msra.mxu0 %v878
      %912 = vmatprep.subr.mxu0 0.0
      %913 = vmatpush2.xpose.msra.mxu0 0.0
      %914 = vmatprep.subr.mxu0 0.0
      %915 = vmatpush2.xpose.msra.mxu0 0.0
      %916 = vmatprep.subr.mxu0 0.0
      %917 = vmatpush2.xpose.msra.mxu0 0.0
      %918 = vmatprep.subr.mxu0 0.0
      %919 = vmatpush2.xpose.msra.mxu0 0.0
      %920 = vmatprep.subr.mxu0 0.0
      %921 = vmatpush2.xpose.msra.mxu0 0.0
      %922 = vmatprep.subr.mxu0 0.0
      %923 = vmatpush2.xpose.msra.mxu0 0.0
      %924 = vmatprep.subr.mxu0 0.0
      %925 = vmatpush2.xpose.msra.mxu0 0.0
      %926 = vmatprep.subr.mxu0 0.0
      %927 = vmatpush2.xpose.msra.mxu0 0.0
      %928 = vmatprep.subr.mxu0 0.0
      %929 = vmatpush2.xpose.msra.mxu0 0.0
      %930 = vmatprep.subr.mxu0 0.0
      %931 = vmatpush2.xpose.msra.mxu0 0.0
      %932 = vmatprep.subr.mxu0 0.0
      %933 = vmatpush2.xpose.msra.mxu0 0.0
      %934 = vmatprep.subr.mxu0 0.0
      %935 = vmatpush2.xpose.msra.mxu0 0.0
      %936 = vmatprep.subr.mxu0 0.0
      %937 = vmatpush2.xpose.msra.mxu0 0.0
      %938 = vmatprep.subr.mxu0 0.0
      %939 = vmatpush2.xpose.msra.mxu0 0.0
      %940 = vmatprep.subr.mxu0 0.0
      %941 = vmatpush2.xpose.msra.mxu0 0.0
      %942 = vmatprep.subr.mxu0 0.0
      %943 = vmatpush2.xpose.msra.mxu0 0.0
      %944 = vmatprep.mubr.f32.mxu0 0.0
      %945 = vmatmul.mubr.f32.gmra.mxu0 %v876
      %v946 = vpop.f32.mrf.mxu0
      %v947 = vadd.f32 %v870, %v946
      %v948 = vpop.f32.mrf.mxu0
      %949 = vdwg.mxu0
      %v950 = vmul.f32 %v947, 0.25
      %v951 = vsel %vm641, %v950, -inf
      %952 = vmax.xlane.f32.xlu0 %v951
      %v953 = vpop.xlane.xlu0 %952
      %v954 = vsub.f32 %v950, %v953
      %v955 = vmul.f32 %v954, 1.442695
      %v956 = vpow.pop %v955
      %v957 = vsel %vm641, %v956, 0.0
      %958 = vadd.xlane.f32.xlu0 %v957
      %v959 = vpop.xlane.xlu0 %958
      %v960 = vrcp.pop %v959
      %v961 = vmul.f32 %v956, %v960
      %962 = vrot.lane.b32.xlu0 %v415, 48
      %v963 = vpop.permute.xlu0 %962
      %v966 = vsel %vm641, %v961, 0
      %968 = vmatprep.subr.mxu0 0.0
      %969 = vmatpush1.msra.mxu0 0.0
      %970 = vmatprep.subr.mxu0 0.0
      %971 = vmatpush1.msra.mxu0 0.0
      %972 = vmatprep.subr.mxu0 0.0
      %973 = vmatpush1.msra.mxu0 0.0
      %974 = vmatprep.subr.mxu0 0.0
      %975 = vmatpush1.msra.mxu0 0.0
      %976 = vmatprep.subr.mxu0 0.0
      %977 = vmatpush1.msra.mxu0 0.0
      %978 = vmatprep.subr.mxu0 0.0
      %979 = vmatpush1.msra.mxu0 0.0
      %980 = vmatprep.subr.mxu0 0.0
      %981 = vmatpush1.msra.mxu0 0.0
      %982 = vmatprep.subr.mxu0 0.0
      %983 = vmatpush1.msra.mxu0 0.0
      %984 = vmatprep.subr.mxu0 0.0
      %985 = vmatpush1.msra.mxu0 0.0
      %986 = vmatprep.subr.mxu0 0.0
      %987 = vmatpush1.msra.mxu0 0.0
      %988 = vmatprep.subr.mxu0 0.0
      %989 = vmatpush1.msra.mxu0 0.0
      %990 = vmatprep.subr.mxu0 0.0
      %991 = vmatpush1.msra.mxu0 0.0
      %992 = vmatprep.subr.mxu0 0.0
      %993 = vmatpush1.msra.mxu0 0.0
      %994 = vmatprep.subr.mxu0 0.0
      %995 = vmatpush1.msra.mxu0 0.0
      %996 = vmatprep.subr.mxu0 0.0
      %997 = vmatpush1.msra.mxu0 0.0
      %998 = vmatprep.subr.mxu0 0.0
      %999 = vmatpush1.msra.mxu0 %v963
      %1000 = vmatprep.subr.mxu0 0.0
      %1001 = vmatpush2.msra.mxu0 0.0
      %1002 = vmatprep.subr.mxu0 0.0
      %1003 = vmatpush2.msra.mxu0 0.0
      %1004 = vmatprep.subr.mxu0 0.0
      %1005 = vmatpush2.msra.mxu0 0.0
      %1006 = vmatprep.subr.mxu0 0.0
      %1007 = vmatpush2.msra.mxu0 0.0
      %1008 = vmatprep.subr.mxu0 0.0
      %1009 = vmatpush2.msra.mxu0 0.0
      %1010 = vmatprep.subr.mxu0 0.0
      %1011 = vmatpush2.msra.mxu0 0.0
      %1012 = vmatprep.subr.mxu0 0.0
      %1013 = vmatpush2.msra.mxu0 0.0
      %1014 = vmatprep.subr.mxu0 0.0
      %1015 = vmatpush2.msra.mxu0 0.0
      %1016 = vmatprep.subr.mxu0 0.0
      %1017 = vmatpush2.msra.mxu0 0.0
      %1018 = vmatprep.subr.mxu0 0.0
      %1019 = vmatpush2.msra.mxu0 0.0
      %1020 = vmatprep.subr.mxu0 0.0
      %1021 = vmatpush2.msra.mxu0 0.0
      %1022 = vmatprep.subr.mxu0 0.0
      %1023 = vmatpush2.msra.mxu0 0.0
      %1024 = vmatprep.subr.mxu0 0.0
      %1025 = vmatpush2.msra.mxu0 0.0
      %1026 = vmatprep.subr.mxu0 0.0
      %1027 = vmatpush2.msra.mxu0 0.0
      %1028 = vmatprep.subr.mxu0 0.0
      %1029 = vmatpush2.msra.mxu0 0.0
      %1030 = vmatprep.subr.mxu0 0.0
      %1031 = vmatpush2.msra.mxu0 0.0
      %1032 = vmatprep.mubr.f32.mxu0 0.0
      %1033 = vmatmul.mubr.f32.gmra.mxu0 %v966
      %v1034 = vpop.f32.mrf.mxu0
      %v1035 = vadd.f32 0.0, %v1034
      %v1036 = vpop.f32.mrf.mxu0
      %1037 = vdwg.mxu0
      %v1039 = vsel %vm434, %v1035, 0
      %1041 = vmatprep.subr.mxu0 0.0
      %1042 = vmatpush1.msra.mxu0 0.0
      %1043 = vmatprep.subr.mxu0 0.0
      %1044 = vmatpush1.msra.mxu0 0.0
      %1045 = vmatprep.subr.mxu0 0.0
      %1046 = vmatpush1.msra.mxu0 0.0
      %1047 = vmatprep.subr.mxu0 0.0
      %1048 = vmatpush1.msra.mxu0 0.0
      %1049 = vmatprep.subr.mxu0 0.0
      %1050 = vmatpush1.msra.mxu0 0.0
      %1051 = vmatprep.subr.mxu0 0.0
      %1052 = vmatpush1.msra.mxu0 0.0
      %1053 = vmatprep.subr.mxu0 0.0
      %1054 = vmatpush1.msra.mxu0 0.0
      %1055 = vmatprep.subr.mxu0 0.0
      %1056 = vmatpush1.msra.mxu0 0.0
      %1057 = vmatprep.subr.mxu0 0.0
      %1058 = vmatpush1.msra.mxu0 0.0
      %1059 = vmatprep.subr.mxu0 0.0
      %1060 = vmatpush1.msra.mxu0 0.0
      %1061 = vmatprep.subr.mxu0 0.0
      %1062 = vmatpush1.msra.mxu0 0.0
      %1063 = vmatprep.subr.mxu0 0.0
      %1064 = vmatpush1.msra.mxu0 0.0
      %1065 = vmatprep.subr.mxu0 0.0
      %1066 = vmatpush1.msra.mxu0 0.0
      %1067 = vmatprep.subr.mxu0 0.0
      %1068 = vmatpush1.msra.mxu0 0.0
      %1069 = vmatprep.subr.mxu0 0.0
      %1070 = vmatpush1.msra.mxu0 %v309
      %1071 = vmatprep.subr.mxu0 0.0
      %1072 = vmatpush1.msra.mxu0 %v308
      %1073 = vmatprep.subr.mxu0 0.0
      %1074 = vmatpush2.msra.mxu0 0.0
      %1075 = vmatprep.subr.mxu0 0.0
      %1076 = vmatpush2.msra.mxu0 0.0
      %1077 = vmatprep.subr.mxu0 0.0
      %1078 = vmatpush2.msra.mxu0 0.0
      %1079 = vmatprep.subr.mxu0 0.0
      %1080 = vmatpush2.msra.mxu0 0.0
      %1081 = vmatprep.subr.mxu0 0.0
      %1082 = vmatpush2.msra.mxu0 0.0
      %1083 = vmatprep.subr.mxu0 0.0
      %1084 = vmatpush2.msra.mxu0 0.0
      %1085 = vmatprep.subr.mxu0 0.0
      %1086 = vmatpush2.msra.mxu0 0.0
      %1087 = vmatprep.subr.mxu0 0.0
      %1088 = vmatpush2.msra.mxu0 0.0
      %1089 = vmatprep.subr.mxu0 0.0
      %1090 = vmatpush2.msra.mxu0 0.0
      %1091 = vmatprep.subr.mxu0 0.0
      %1092 = vmatpush2.msra.mxu0 0.0
      %1093 = vmatprep.subr.mxu0 0.0
      %1094 = vmatpush2.msra.mxu0 0.0
      %1095 = vmatprep.subr.mxu0 0.0
      %1096 = vmatpush2.msra.mxu0 0.0
      %1097 = vmatprep.subr.mxu0 0.0
      %1098 = vmatpush2.msra.mxu0 0.0
      %1099 = vmatprep.subr.mxu0 0.0
      %1100 = vmatpush2.msra.mxu0 0.0
      %1101 = vmatprep.subr.mxu0 0.0
      %1102 = vmatpush2.msra.mxu0 0.0
      %1103 = vmatprep.subr.mxu0 0.0
      %1104 = vmatpush2.msra.mxu0 0.0
      %1105 = vmatprep.mubr.f32.mxu0 0.0
      %1106 = vmatmul.mubr.f32.gmra.mxu0 %v1039
      %v1107 = vpop.f32.mrf.mxu0
      %v1108 = vadd.f32 0.0, %v1107
      %v1109 = vpop.f32.mrf.mxu0
      %1110 = vdwg.mxu0
      %v1112 = vsel %vm434, %v726, 0
      %1114 = vmatprep.subr.mxu0 0.0
      %1115 = vmatpush1.msra.mxu0 0.0
      %1116 = vmatprep.subr.mxu0 0.0
      %1117 = vmatpush1.msra.mxu0 0.0
      %1118 = vmatprep.subr.mxu0 0.0
      %1119 = vmatpush1.msra.mxu0 0.0
      %1120 = vmatprep.subr.mxu0 0.0
      %1121 = vmatpush1.msra.mxu0 0.0
      %1122 = vmatprep.subr.mxu0 0.0
      %1123 = vmatpush1.msra.mxu0 0.0
      %1124 = vmatprep.subr.mxu0 0.0
      %1125 = vmatpush1.msra.mxu0 0.0
      %1126 = vmatprep.subr.mxu0 0.0
      %1127 = vmatpush1.msra.mxu0 0.0
      %1128 = vmatprep.subr.mxu0 0.0
      %1129 = vmatpush1.msra.mxu0 0.0
      %1130 = vmatprep.subr.mxu0 0.0
      %1131 = vmatpush1.msra.mxu0 0.0
      %1132 = vmatprep.subr.mxu0 0.0
      %1133 = vmatpush1.msra.mxu0 0.0
      %1134 = vmatprep.subr.mxu0 0.0
      %1135 = vmatpush1.msra.mxu0 0.0
      %1136 = vmatprep.subr.mxu0 0.0
      %1137 = vmatpush1.msra.mxu0 0.0
      %1138 = vmatprep.subr.mxu0 0.0
      %1139 = vmatpush1.msra.mxu0 0.0
      %1140 = vmatprep.subr.mxu0 0.0
      %1141 = vmatpush1.msra.mxu0 0.0
      %1142 = vmatprep.subr.mxu0 0.0
      %1143 = vmatpush1.msra.mxu0 %v307
      %1144 = vmatprep.subr.mxu0 0.0
      %1145 = vmatpush1.msra.mxu0 %v306
      %1146 = vmatprep.subr.mxu0 0.0
      %1147 = vmatpush2.msra.mxu0 0.0
      %1148 = vmatprep.subr.mxu0 0.0
      %1149 = vmatpush2.msra.mxu0 0.0
      %1150 = vmatprep.subr.mxu0 0.0
      %1151 = vmatpush2.msra.mxu0 0.0
      %1152 = vmatprep.subr.mxu0 0.0
      %1153 = vmatpush2.msra.mxu0 0.0
      %1154 = vmatprep.subr.mxu0 0.0
      %1155 = vmatpush2.msra.mxu0 0.0
      %1156 = vmatprep.subr.mxu0 0.0
      %1157 = vmatpush2.msra.mxu0 0.0
      %1158 = vmatprep.subr.mxu0 0.0
      %1159 = vmatpush2.msra.mxu0 0.0
      %1160 = vmatprep.subr.mxu0 0.0
      %1161 = vmatpush2.msra.mxu0 0.0
      %1162 = vmatprep.subr.mxu0 0.0
      %1163 = vmatpush2.msra.mxu0 0.0
      %1164 = vmatprep.subr.mxu0 0.0
      %1165 = vmatpush2.msra.mxu0 0.0
      %1166 = vmatprep.subr.mxu0 0.0
      %1167 = vmatpush2.msra.mxu0 0.0
      %1168 = vmatprep.subr.mxu0 0.0
      %1169 = vmatpush2.msra.mxu0 0.0
      %1170 = vmatprep.subr.mxu0 0.0
      %1171 = vmatpush2.msra.mxu0 0.0
      %1172 = vmatprep.subr.mxu0 0.0
      %1173 = vmatpush2.msra.mxu0 0.0
      %1174 = vmatprep.subr.mxu0 0.0
      %1175 = vmatpush2.msra.mxu0 0.0
      %1176 = vmatprep.subr.mxu0 0.0
      %1177 = vmatpush2.msra.mxu0 0.0
      %1178 = vmatprep.mubr.f32.mxu0 0.0
      %1179 = vmatmul.mubr.f32.gmra.mxu0 %v1112
      %v1180 = vpop.f32.mrf.mxu0
      %v1181 = vadd.f32 %v1108, %v1180
      %v1182 = vpop.f32.mrf.mxu0
      %1183 = vdwg.mxu0
      %v1184 = vadd.f32 %v301, %v1181
      %v1185 = vsel %vm344, %v1184, 0.0
      %1186 = vadd.xlane.f32.xlu0 %v1185
      %v1187 = vpop.xlane.xlu0 %1186
      %v1188 = vrcp.pop 32.0
      %v1189 = vmul.f32 %v1187, %v1188
      %v1190 = vsub.f32 %v1184, %v1189
      %v1191 = vmul.f32 %v1190, %v1190
      %v1192 = vsel %vm344, %v1191, 0.0
      %1193 = vadd.xlane.f32.xlu0 %v1192
      %v1194 = vpop.xlane.xlu0 %1193
      %v1195 = vmul.f32 %v1194, %v1188
      %v1196 = vadd.f32 %v1195, 1e-05
      %v1197 = vrsqrt.pop %v1196
      %v1198 = vmul.f32 %v1190, %v1197
      %v1199 = vld [vmem:[%s6] sm:$0x1]
      %v1201 = vlaneseq
      %v1202 = vshrl.u32 %v1201, 7
      %v1203 = vsub.s32 0, %v1202
      %v1204 = vrot.slane %v1199, %v1203
      %v1206 = vmul.f32 %v1198, %v1204
      %v1207 = vld [vmem:[%s7] sm:$0x1]
      %v1209 = vlaneseq
      %v1210 = vshrl.u32 %v1209, 7
      %v1211 = vsub.s32 0, %v1210
      %v1212 = vrot.slane %v1207, %v1211
      %v1214 = vadd.f32 %v1206, %v1212
      %1215 = vst.msk [vmem:[%s300] sm:$0xff] %vm344, %v1214
      %p1216 = scmp.lt.s32.totalorder %s19, 1
      %s1217 = scalar_select %p1216, %s19, 1
      %s1218 = smul.addr %s1217, 8
      %s1219 = scalar_lea.vmem %s8, %s1218
      // Predicated region
      $region53: #{rel_learnable_attn_forward.1} parent=51 // pred_check
        %p1220 = pneg %p210
      $region54: #{rel_learnable_attn_forward.1} parent=51 // pred_check_branch
        %1222 = sbr.rel (%p1220) target = $region56
      $region55: #{rel_learnable_attn_forward.1} parent=51 // pred_region
        _
      $region56: #{rel_learnable_attn_forward.1} parent=51 // pred_fallthru
        _
    $region52: #{rel_learnable_attn_forward.1} parent=5 // pred_fallthru
      _
    %p1223 = scmp.le.s32.totalorder 2, %s14
    // Predicated region
    $region57: #{rel_learnable_attn_forward.1} parent=5 // pred_check
      %p1224 = pneg %p1223
    $region58: #{rel_learnable_attn_forward.1} parent=5 // pred_check_branch
      %1226 = sbr.rel (%p1224) target = $region60
    $region59: #{rel_learnable_attn_forward.1} parent=5 // pred_region
      %s1227 = ssub.s32 %s14, 2
      // Predicated region
      $region61: #{rel_learnable_attn_forward.1} parent=59 // pred_check
        %p1228 = pneg %p216
      $region62: #{rel_learnable_attn_forward.1} parent=59 // pred_check_branch
        %1230 = sbr.rel (%p1228) target = $region64
      $region63: #{rel_learnable_attn_forward.1} parent=59 // pred_region
        %p1231 = scmp.lt.s32.totalorder %s20, 1
        %s1232 = scalar_select %p1231, %s20, 1
        %s1233 = smul.addr %s1232, 8
        %s1234 = scalar_lea.vmem %s8, %s1233
      $region64: #{rel_learnable_attn_forward.1} parent=59 // pred_fallthru
        _
    $region60: #{rel_learnable_attn_forward.1} parent=5 // pred_fallthru
      _
  $region6: #{rel_learnable_attn_forward.1} parent=0 // loop_footer
    %s18 = sadd.s32 1, %s14
  $region7: #{rel_learnable_attn_forward.1} parent=0 // loop_footer_branch
    %13 = sbr.rel target = $region3
  $region8: #{rel_learnable_attn_forward.1} parent=0 // loop_exit
    _

</llo_original>
